<compile_context>
chip_gen: v5e
topology: v5e:2x2
jax: 0.10.0
libtpu: 0.0.40
codegen_flags: <defaults>
</compile_context>

<pallas_src>
import functools

import jax
import jax.numpy as jnp
from jax.experimental import pallas as pl
from jax.experimental.pallas import tpu as pltpu

_HIGHEST = jax.lax.Precision.HIGHEST


# ----------------------------------------------------------------------------
# Kernels
# ----------------------------------------------------------------------------
def _se_fused_kernel(x_ref, w1_ref, w2_ref, o_ref, *, inv_hw, block_b):
    """Single-pass SE: x read once, written once.

    x_ref / o_ref: (block_b, C, HW)   (C on sublanes, HW on lanes)
    w1_ref: (C_red, C) f32,  w2_ref: (C, C_red) f32   (resident across grid)
    """
    # Spatial mean, accumulated in f32.  Lane-reduce with keepdims keeps the
    # result (block_b, C, 1) in the C-on-sublanes orientation the final
    # broadcast multiply needs -- no relayout anywhere in this kernel.
    y = jnp.sum(x_ref[...], axis=2, keepdims=True, dtype=jnp.float32) * inv_hw
    w1 = w1_ref[...]
    w2 = w2_ref[...]
    # Static unroll over the (small) batch block: two tiny MXU matvecs per
    # element, negligible next to the HBM streaming of the block.
    for j in range(block_b):
        yj = y[j]                                                       # (C, 1)
        hj = jnp.maximum(
            jnp.dot(w1, yj, preferred_element_type=jnp.float32,
                    precision=_HIGHEST), 0.0)                           # (C_red, 1)
        gj = jax.nn.sigmoid(
            jnp.dot(w2, hj, preferred_element_type=jnp.float32,
                    precision=_HIGHEST))                                # (C, 1)
        # Lane-broadcast of the per-channel gate over HW; multiply in the
        # input's native dtype.
        o_ref[j] = x_ref[j] * gj.astype(o_ref.dtype)


def _se_gate_kernel(x_ref, w1_ref, w2_ref, g_ref, acc_ref, *, inv_hw):
    """Phase 1 of the HW-tiled path: per-(batch) channel gates.

    Grid = (B, n_hw), HW axis last / "arbitrary".
    x_ref: (1, C, hw_t); g_ref: (1, C, 1) f32; acc_ref: (1, C, 1) f32 scratch.
    """
    t = pl.program_id(1)

    @pl.when(t == 0)
    def _():
        acc_ref[...] = jnp.zeros_like(acc_ref)

    acc_ref[...] += jnp.sum(x_ref[...], axis=2, keepdims=True, dtype=jnp.float32)

    @pl.when(t == pl.num_programs(1) - 1)
    def _():
        y = acc_ref[0] * inv_hw                                         # (C, 1)
        h = jnp.maximum(
            jnp.dot(w1_ref[...], y, preferred_element_type=jnp.float32,
                    precision=_HIGHEST), 0.0)                           # (C_red, 1)
        s = jnp.dot(w2_ref[...], h, preferred_element_type=jnp.float32,
                    precision=_HIGHEST)                                 # (C, 1)
        g_ref[0] = jax.nn.sigmoid(s)


def _se_scale_kernel(x_ref, g_ref, o_ref):
    """Phase 2: pure elementwise scale (gate broadcast along the HW lanes)."""
    o_ref[...] = x_ref[...] * g_ref[...].astype(o_ref.dtype)


# ----------------------------------------------------------------------------
# Wrapper-side helpers
# ----------------------------------------------------------------------------
def _vmem_capacity_bytes():
    try:
        info = pltpu.get_tpu_info()
        cap = getattr(info, "vmem_capacity_bytes", None)
        if cap:
            return int(cap)
    except Exception:
        pass
    return 64 << 20          # conservative default (v7x per-core VMEM)


def _divisors(n):
    ds, i = set(), 1
    while i * i <= n:
        if n % i == 0:
            ds.add(i)
            ds.add(n // i)
        i += 1
    return sorted(ds)


def _pick_block_b(batch, per_b_bytes, max_block_bytes):
    cands = [d for d in _divisors(batch)
             if d * per_b_bytes <= max_block_bytes and d <= 64]
    if not cands:
        return 1
    # Prefer >= 4 grid steps so on v7x each of the 2 TensorCores still gets
    # >= 2 steps to software-pipeline after the "parallel" batch-axis split;
    # fall back to >= 2 steps, then to whatever fits.
    for min_steps in (4, 2):
        tier = [d for d in cands if batch // d >= min_steps]
        if tier:
            return max(tier)
    return max(cands)


def _pick_hw_tile(hw, c, itemsize, target_bytes):
    # HW sits on the lane axis, so a tile must be a multiple of 128 (this is
    # dtype-independent; the sublane dim is the full C extent so no dtype-
    # specific sublane multiple is needed).
    cands = [d for d in _divisors(hw)
             if d % 128 == 0 and d * c * itemsize <= target_bytes]
    return max(cands) if cands else None


# ----------------------------------------------------------------------------
# pallas_call wrappers
# ----------------------------------------------------------------------------
def _se_fused(x3, w1f, w2f, *, max_block_bytes, vmem_cap):
    B, C, HW = x3.shape
    itemsize = jnp.dtype(x3.dtype).itemsize
    per_b = C * HW * itemsize
    block_b = _pick_block_b(B, per_b, max(max_block_bytes, per_b))
    grid_b = B // block_b

    block_bytes = block_b * per_b
    w_bytes = (w1f.size + w2f.size) * 4
    # in + out blocks double-buffered, both weights double-buffered, headroom.
    vmem_limit = min(int(4 * block_bytes + 4 * w_bytes + (4 << 20)),
                     int(vmem_cap * 7 // 8))

    kernel = functools.partial(_se_fused_kernel, inv_hw=1.0 / HW,
                               block_b=block_b)
    return pl.pallas_call(
        kernel,
        out_shape=jax.ShapeDtypeStruct((B, C, HW), x3.dtype),
        grid_spec=pltpu.PrefetchScalarGridSpec(
            num_scalar_prefetch=0,
            grid=(grid_b,),
            in_specs=[
                pl.BlockSpec((block_b, C, HW), lambda i: (i, 0, 0)),
                # Constant index maps: weights stay resident, not re-DMA'd.
                pl.BlockSpec(w1f.shape, lambda i: (0, 0)),
                pl.BlockSpec(w2f.shape, lambda i: (0, 0)),
            ],
            out_specs=pl.BlockSpec((block_b, C, HW), lambda i: (i, 0, 0)),
        ),
        compiler_params=pltpu.CompilerParams(
            dimension_semantics=("parallel",),
            vmem_limit_bytes=vmem_limit),
    )(x3, w1f, w2f)


def _se_two_phase(x3, w1f, w2f, *, hw_tile_target_bytes, max_block_bytes,
                  vmem_cap):
    B, C, HW = x3.shape
    itemsize = jnp.dtype(x3.dtype).itemsize
    hw_t = _pick_hw_tile(HW, C, itemsize, hw_tile_target_bytes)
    if hw_t is None:
        # TODO(synk): HW with no multiple-of-128 divisor and a per-batch slab
        # too big for the fused budget falls back to whole-slab fused blocks;
        # extreme shapes could exceed VMEM there.
        return _se_fused(x3, w1f, w2f, max_block_bytes=C * HW * itemsize,
                         vmem_cap=vmem_cap)

    n_hw = HW // hw_t
    tile_bytes = hw_t * C * itemsize
    w_bytes = (w1f.size + w2f.size) * 4
    vmem_limit = min(int(4 * tile_bytes + 4 * w_bytes + (4 << 20)),
                     int(vmem_cap * 7 // 8))

    # Phase 1: per-batch channel gates.  HW reduction axis is last/"arbitrary";
    # the f32 partial sum lives in a resident VMEM scratch and the excite runs
    # once at the final HW tile.
    # TODO(synk): with B == 1 this phase runs on a single v7x TensorCore.
    gates = pl.pallas_call(
        functools.partial(_se_gate_kernel, inv_hw=1.0 / HW),
        out_shape=jax.ShapeDtypeStruct((B, C, 1), jnp.float32),
        grid_spec=pltpu.PrefetchScalarGridSpec(
            num_scalar_prefetch=0,
            grid=(B, n_hw),
            in_specs=[
                pl.BlockSpec((1, C, hw_t), lambda b, t: (b, 0, t)),
                pl.BlockSpec(w1f.shape, lambda b, t: (0, 0)),
                pl.BlockSpec(w2f.shape, lambda b, t: (0, 0)),
            ],
            out_specs=pl.BlockSpec((1, C, 1), lambda b, t: (b, 0, 0)),
            scratch_shapes=[pltpu.VMEM((1, C, 1), jnp.float32)],
        ),
        compiler_params=pltpu.CompilerParams(
            dimension_semantics=("parallel", "arbitrary"),
            vmem_limit_bytes=vmem_limit),
    )(x3, w1f, w2f)

    # Phase 2: elementwise scale, fully parallel grid, full-size streaming
    # tiles (no scratch/weights resident, so no reason to shrink them).
    return pl.pallas_call(
        _se_scale_kernel,
        out_shape=jax.ShapeDtypeStruct((B, C, HW), x3.dtype),
        grid_spec=pltpu.PrefetchScalarGridSpec(
            num_scalar_prefetch=0,
            grid=(B, n_hw),
            in_specs=[
                pl.BlockSpec((1, C, hw_t), lambda b, t: (b, 0, t)),
                pl.BlockSpec((1, C, 1), lambda b, t: (b, 0, 0)),
            ],
            out_specs=pl.BlockSpec((1, C, hw_t), lambda b, t: (b, 0, t)),
        ),
        compiler_params=pltpu.CompilerParams(
            dimension_semantics=("parallel", "parallel"),
            vmem_limit_bytes=vmem_limit),
    )(x3, gates)


def se_layer(x, w1, w2, *, fused_max_block_bytes=None,
             hw_tile_target_bytes=4 << 20):
    """Squeeze-and-Excitation forward.

    x:  (B, C, H, W) NCHW (PyTorch layout) -- used natively, no transpose.
    w1: (C//r, C)  fc1 weight (bias-free).
    w2: (C, C//r)  fc2 weight (bias-free).
    """
    B, C, H, W = x.shape
    HW = H * W
    # Free, metadata-only reshape of the contiguous NCHW tensor: C lands on the
    # sublane axis and HW on the 128-lane axis.  No HBM traffic here or for the
    # inverse reshape on the way out.
    x3 = x.reshape(B, C, HW)
    # Pre-cast weights to f32 once in the wrapper (tiny), native orientation.
    w1f = w1.astype(jnp.float32)          # (C_red, C)
    w2f = w2.astype(jnp.float32)          # (C, C_red)

    vmem_cap = _vmem_capacity_bytes()
    if fused_max_block_bytes is None:
        # 4x double-buffered blocks of this size use ~3/4 of per-core VMEM:
        # ~24 MiB slabs on v5e/v6e (128 MiB), ~12 MiB on v7x (64 MiB).
        fused_max_block_bytes = (vmem_cap * 3) // 16

    per_b = HW * C * jnp.dtype(x.dtype).itemsize
    if per_b <= fused_max_block_bytes:
        out3 = _se_fused(x3, w1f, w2f,
                         max_block_bytes=fused_max_block_bytes,
                         vmem_cap=vmem_cap)
    else:
        out3 = _se_two_phase(x3, w1f, w2f,
                             hw_tile_target_bytes=hw_tile_target_bytes,
                             max_block_bytes=fused_max_block_bytes,
                             vmem_cap=vmem_cap)
    return out3.reshape(B, C, H, W)


# ----------------------------------------------------------------------------
# Pure-JAX reference (mirrors the PyTorch forward)
# ----------------------------------------------------------------------------
def se_reference(x, w1, w2):
    y = jnp.mean(x.astype(jnp.float32), axis=(2, 3))                    # (B, C)
    y = jnp.maximum(jnp.dot(y, w1.T.astype(jnp.float32),
                            precision=_HIGHEST), 0.0)                   # (B, C//r)
    y = jax.nn.sigmoid(jnp.dot(y, w2.T.astype(jnp.float32),
                               precision=_HIGHEST))                     # (B, C)
    return x * y[:, :, None, None].astype(x.dtype)


if __name__ == "__main__":
    B, C, H, W = 2, 128, 16, 16
    reduction = 16
    C_red = C // reduction

    key = jax.random.PRNGKey(0)
    kx, k1, k2 = jax.random.split(key, 3)
    x = jax.random.normal(kx, (B, C, H, W), dtype=jnp.float32)
    w1 = jax.random.normal(k1, (C_red, C), dtype=jnp.float32) * 0.1   # fc1 weight
    w2 = jax.random.normal(k2, (C, C_red), dtype=jnp.float32) * 0.1   # fc2 weight

    ref = se_reference(x, w1, w2)

    # Fused single-pass path (default for SE-sized activations).
    out_fused = jax.block_until_ready(se_layer(x, w1, w2))
    assert jnp.allclose(out_fused, ref, atol=1e-4, rtol=1e-4), "fused path mismatch"

    # Force the two-phase HW-tiled path (large-activation fallback) with
    # artificially small budgets so it is exercised at these shapes
    # (hw_t = 128 -> 2 spatial tiles per batch, accumulator path covered).
    out_tiled = jax.block_until_ready(
        se_layer(x, w1, w2, fused_max_block_bytes=64 * 1024,
                 hw_tile_target_bytes=64 * 1024))
    assert jnp.allclose(out_tiled, ref, atol=1e-4, rtol=1e-4), "tiled path mismatch"

    print("KERNEL_OK")
</pallas_src>

<mosaic_0001>
module attributes {stable_mosaic.version = 11 : i64} {
  func.func @_se_fused_kernel(%arg0: i32, %arg1: memref<1x128x256xf32, #tpu.memory_space<vmem>>, %arg2: memref<8x128xf32, #tpu.memory_space<vmem>>, %arg3: memref<128x8xf32, #tpu.memory_space<vmem>>, %arg4: memref<1x128x256xf32, #tpu.memory_space<vmem>>) attributes {dimension_semantics = [#tpu.dimension_semantics<parallel>], iteration_bounds = array<i64: 2>, scalar_prefetch = 0 : i64, scratch_operands = 0 : i64, tpu.core_type = #tpu.core_type<tc>, window_params = [{transform_indices = @transform_0, window_bounds = array<i64: 1, 128, 256>}, {pipeline_mode = #tpu.pipeline_mode<synchronous>, transform_indices = @transform_1, window_bounds = array<i64: 8, 128>}, {pipeline_mode = #tpu.pipeline_mode<synchronous>, transform_indices = @transform_2, window_bounds = array<i64: 128, 8>}, {transform_indices = @transform_3, window_bounds = array<i64: 1, 128, 256>}]} {
    %c0 = arith.constant 0 : index
    %c0_0 = arith.constant 0 : index
    %c0_1 = arith.constant 0 : index
    %0 = vector.load %arg1[%c0, %c0_0, %c0_1] : memref<1x128x256xf32, #tpu.memory_space<vmem>>, vector<1x128x256xf32>
    %cst = arith.constant dense<0.000000e+00> : vector<1x128xf32>
    %1 = vector.multi_reduction <add>, %0, %cst [2] : vector<1x128x256xf32> to vector<1x128xf32>
    %2 = vector.shape_cast %1 : vector<1x128xf32> to vector<1x128x1xf32>
    %cst_2 = arith.constant 3.906250e-03 : f32
    %3 = vector.broadcast %cst_2 : f32 to vector<1x128x1xf32>
    %4 = arith.mulf %2, %3 : vector<1x128x1xf32>
    %c0_3 = arith.constant 0 : index
    %c0_4 = arith.constant 0 : index
    %5 = vector.load %arg2[%c0_3, %c0_4] : memref<8x128xf32, #tpu.memory_space<vmem>>, vector<8x128xf32>
    %c0_5 = arith.constant 0 : index
    %c0_6 = arith.constant 0 : index
    %6 = vector.load %arg3[%c0_5, %c0_6] : memref<128x8xf32, #tpu.memory_space<vmem>>, vector<128x8xf32>
    %7 = vector.shape_cast %4 : vector<1x128x1xf32> to vector<128x1xf32>
    %cst_7 = arith.constant dense<0.000000e+00> : vector<8x1xf32>
    %8 = tpu.matmul %5, %7, %cst_7 {dimension_numbers = #tpu.dot_dimension_numbers<[1], [0], [0], [1], [0, 0, 1, 1], [], []>, precision = #tpu.contract_precision<fp32>} : vector<8x128xf32>, vector<128x1xf32>, vector<8x1xf32> -> vector<8x1xf32>
    %cst_8 = arith.constant 0.000000e+00 : f32
    %9 = vector.broadcast %cst_8 : f32 to vector<8x1xf32>
    %10 = arith.maximumf %8, %9 : vector<8x1xf32>
    %cst_9 = arith.constant dense<0.000000e+00> : vector<128x1xf32>
    %11 = tpu.matmul %6, %10, %cst_9 {dimension_numbers = #tpu.dot_dimension_numbers<[1], [0], [0], [1], [0, 0, 1, 1], [], []>, precision = #tpu.contract_precision<fp32>} : vector<128x8xf32>, vector<8x1xf32>, vector<128x1xf32> -> vector<128x1xf32>
    %12 = arith.negf %11 : vector<128x1xf32>
    %13 = math.exp %12 : vector<128x1xf32>
    %cst_10 = arith.constant 1.000000e+00 : f32
    %14 = vector.broadcast %cst_10 : f32 to vector<128x1xf32>
    %15 = arith.addf %14, %13 : vector<128x1xf32>
    %16 = arith.divf %14, %15 : vector<128x1xf32>
    %c0_11 = arith.constant 0 : index
    %c0_12 = arith.constant 0 : index
    %c0_13 = arith.constant 0 : index
    %17 = vector.load %arg1[%c0_11, %c0_12, %c0_13] : memref<1x128x256xf32, #tpu.memory_space<vmem>>, vector<1x128x256xf32>
    %18 = vector.shape_cast %17 : vector<1x128x256xf32> to vector<128x256xf32>
    %19 = vector.broadcast %16 : vector<128x1xf32> to vector<128x256xf32>
    %20 = arith.mulf %18, %19 : vector<128x256xf32>
    %c0_14 = arith.constant 0 : index
    %c0_15 = arith.constant 0 : index
    %c0_16 = arith.constant 0 : index
    %21 = vector.load %arg4[%c0_14, %c0_15, %c0_16] : memref<1x128x256xf32, #tpu.memory_space<vmem>>, vector<1x128x256xf32>
    %22 = vector.shape_cast %21 : vector<1x128x256xf32> to vector<128x256xf32>
    %23 = vector.shape_cast %20 : vector<128x256xf32> to vector<1x128x256xf32>
    tpu.vector_store %arg4[%c0_14, %c0_15, %c0_16], %23 {strides = array<i32>} : memref<1x128x256xf32, #tpu.memory_space<vmem>>, vector<1x128x256xf32>,
    return
  }
  func.func @transform_0(%arg0: i32) -> (i32, i32, i32) {
    %c0_i32 = arith.constant 0 : i32
    %c0_i32_0 = arith.constant 0 : i32
    %c0_i32_1 = arith.constant 0 : i32
    return %arg0, %c0_i32, %c0_i32_0 : i32, i32, i32
  }
  func.func @transform_1(%arg0: i32) -> (i32, i32) {
    %c0_i32 = arith.constant 0 : i32
    %c0_i32_0 = arith.constant 0 : i32
    %c0_i32_1 = arith.constant 0 : i32
    return %c0_i32, %c0_i32_0 : i32, i32
  }
  func.func @transform_2(%arg0: i32) -> (i32, i32) {
    %c0_i32 = arith.constant 0 : i32
    %c0_i32_0 = arith.constant 0 : i32
    %c0_i32_1 = arith.constant 0 : i32
    return %c0_i32, %c0_i32_0 : i32, i32
  }
  func.func @transform_3(%arg0: i32) -> (i32, i32, i32) {
    %c0_i32 = arith.constant 0 : i32
    %c0_i32_0 = arith.constant 0 : i32
    %c0_i32_1 = arith.constant 0 : i32
    return %arg0, %c0_i32, %c0_i32_0 : i32, i32, i32
  }
}

</mosaic_0001>

<llo_original>
// kernel: tpu_custom_call.1
$region0: #{tpu_custom_call.1}
  #allocation0 [shape = 'u32[]', space=smem, size = 0x4, offset = 0x4, fixed_abs, tag = 'smem constant byte address 0x4 - core index']
  #allocation1 [shape = 'u32[72,128]{1,0:T(1,128)}', space=vmem, size = 0x9000, scoped, tag = 'internal scratch']
  %s0 = inlined_call_operand.hbm [shape: f32[2,128,256], index: 0, kind: input, shape index: {}]
  %s1 = inlined_call_operand.vmem [shape: f32[8,128], index: 1, kind: input, shape index: {}]
  %s2 = inlined_call_operand.vmem [shape: f32[128,8], index: 2, kind: input, shape index: {}]
  %s3 = inlined_call_operand.hbm [shape: f32[2,128,256], index: 3, kind: output, shape index: {}]
  %s4 = sld [smem:[#allocation0]]
  $region49: #{tpu_custom_call.1} parent=0
    _
  %s6 = ssub.s32 1, %s4
  %s7 = scalar_select 0, %s6, %s4
  $region1: #{tpu_custom_call.1} parent=0
    #allocation2 [shape = 'u8[262144]{0}', space=vmem, size = 0x40000, scoped, tag = 'input window, operand 0']
    #allocation3 [shape = 's32[2]{0}', space=sflag, size = 0x8, scoped, tag = 'scoped memory for tpu_custom_call.1']
    #allocation4 [shape = 's32[2]{0}', space=sflag, size = 0x8, scoped, tag = 'scoped memory for tpu_custom_call.1']
    #allocation5 [shape = 'u8[262144]{0}', space=vmem, size = 0x40000, scoped, tag = 'output window, operand 0']
    %8 = vsyncpa [#allocation3], 0
    %s9 = scalar_lea.sflag [#allocation3], 1
    %10 = vsyncpa %s9, 0
    %11 = vsyncpa [#allocation4], 0
    %s12 = scalar_lea.sflag [#allocation4], 1
    %13 = vsyncpa %s12, 0
    loop: start=0, step=1, limit=4
    $region2: #{tpu_custom_call.1} parent=1 // loop_pre_header
      _
    $region3: #{tpu_custom_call.1} parent=1 // loop_header
      %s15 = sphi 0, %s19
      %p16 = scmp.ge.s32.totalorder %s15, 4
      %s25 = sphi 0, %s27
      %s28 = sphi 0, %s25
      %s29 = sphi 0, %s28
      %s45 = sphi 0, %s29
      %s49 = sphi 0, %s49
      %s51 = sphi 0, %s49
      %s52 = sphi 0, %s51
      %s66 = sphi 0, %s52
      %s70 = sphi 0, %s70
      %s72 = sphi 0, %s70
      %s73 = sphi 0, %s72
      %s87 = sphi 0, %s73
      %s93 = sphi 0, %s95
      %s96 = sphi 0, %s93
      %s97 = sphi 0, %s96
      %s113 = sphi 0, %s97
    $region4: #{tpu_custom_call.1} parent=1 // loop_header_branch
      %18 = sbr.rel (%p16) target = $region8
    $region5: #{tpu_custom_call.1} parent=1 // loop_body
      %s20 = ssub.s32 %s15, 1
      %s21 = ssub.s32 %s15, 2
      %s22 = sadd.s32 %s15, 1
      %s23 = ssub.s32 %s15, %s22
      %p24 = scmp.eq.s32.totalorder %s23, 0
      %s26 = sadd.s32 %s25, 1
      %s27 = scalar_select %p24, %s25, %s26
      %p30 = pneg %p24
      %p31 = scmp.eq.s32.totalorder %s15, 1
      %p32 = por %p30, %p31
      %p33 = scmp.ne.s32.totalorder %s25, %s28
      %p34 = scmp.eq.s32.totalorder %s15, 0
      %p35 = por %p33, %p34
      %p36 = scmp.ne.s32.totalorder %s25, %s28
      %p37 = scmp.eq.s32.totalorder %s20, 1
      %p38 = por %p36, %p37
      %p39 = scmp.ne.s32.totalorder %s28, %s29
      %p40 = scmp.eq.s32.totalorder %s20, 0
      %p41 = por %p39, %p40
      %p42 = scmp.ne.s32.totalorder %s28, %s29
      %p43 = scmp.eq.s32.totalorder %s21, 1
      %p44 = por %p42, %p43
      %p46 = scmp.ne.s32.totalorder %s29, %s45
      %p47 = scmp.eq.s32.totalorder %s21, 0
      %p48 = por %p46, %p47
      %s50 = sadd.s32 %s49, 1
      %p53 = scmp.eq.s32.totalorder %s15, 1
      %p54 = scmp.ne.s32.totalorder %s49, %s51
      %p55 = scmp.eq.s32.totalorder %s15, 0
      %p56 = por %p54, %p55
      %p57 = scmp.ne.s32.totalorder %s49, %s51
      %p58 = scmp.eq.s32.totalorder %s20, 1
      %p59 = por %p57, %p58
      %p60 = scmp.ne.s32.totalorder %s51, %s52
      %p61 = scmp.eq.s32.totalorder %s20, 0
      %p62 = por %p60, %p61
      %p63 = scmp.ne.s32.totalorder %s51, %s52
      %p64 = scmp.eq.s32.totalorder %s21, 1
      %p65 = por %p63, %p64
      %p67 = scmp.ne.s32.totalorder %s52, %s66
      %p68 = scmp.eq.s32.totalorder %s21, 0
      %p69 = por %p67, %p68
      %s71 = sadd.s32 %s70, 1
      %p74 = scmp.eq.s32.totalorder %s15, 1
      %p75 = scmp.ne.s32.totalorder %s70, %s72
      %p76 = scmp.eq.s32.totalorder %s15, 0
      %p77 = por %p75, %p76
      %p78 = scmp.ne.s32.totalorder %s70, %s72
      %p79 = scmp.eq.s32.totalorder %s20, 1
      %p80 = por %p78, %p79
      %p81 = scmp.ne.s32.totalorder %s72, %s73
      %p82 = scmp.eq.s32.totalorder %s20, 0
      %p83 = por %p81, %p82
      %p84 = scmp.ne.s32.totalorder %s72, %s73
      %p85 = scmp.eq.s32.totalorder %s21, 1
      %p86 = por %p84, %p85
      %p88 = scmp.ne.s32.totalorder %s73, %s87
      %p89 = scmp.eq.s32.totalorder %s21, 0
      %p90 = por %p88, %p89
      %s91 = ssub.s32 %s15, %s22
      %p92 = scmp.eq.s32.totalorder %s91, 0
      %s94 = sadd.s32 %s93, 1
      %s95 = scalar_select %p92, %s93, %s94
      %p98 = pneg %p92
      %p99 = scmp.eq.s32.totalorder %s15, 1
      %p100 = por %p98, %p99
      %p101 = scmp.ne.s32.totalorder %s93, %s96
      %p102 = scmp.eq.s32.totalorder %s15, 0
      %p103 = por %p101, %p102
      %p104 = scmp.ne.s32.totalorder %s93, %s96
      %p105 = scmp.eq.s32.totalorder %s20, 1
      %p106 = por %p104, %p105
      %p107 = scmp.ne.s32.totalorder %s96, %s97
      %p108 = scmp.eq.s32.totalorder %s20, 0
      %p109 = por %p107, %p108
      %p110 = scmp.ne.s32.totalorder %s96, %s97
      %p111 = scmp.eq.s32.totalorder %s21, 1
      %p112 = por %p110, %p111
      %p114 = scmp.ne.s32.totalorder %s97, %s113
      %p115 = scmp.eq.s32.totalorder %s21, 0
      %p116 = por %p114, %p115
      %p117 = scmp.le.s32.totalorder 1, %s15
      %p118 = scmp.lt.s32.totalorder %s15, 3
      %p119 = pnand %p117, %p118
      %p120 = pneg %p119
      // Predicated region
      $region9: #{tpu_custom_call.1} parent=5 // pred_check
        _
      $region10: #{tpu_custom_call.1} parent=5 // pred_check_branch
        %122 = sbr.rel (%p119) target = $region12
      $region11: #{tpu_custom_call.1} parent=5 // pred_region
        %s123 = ssub.s32 %s15, 1
        // Predicated region
        $region13: #{tpu_custom_call.1} parent=11 // pred_check
          %p124 = pneg %p62
        $region14: #{tpu_custom_call.1} parent=11 // pred_check_branch
          %126 = sbr.rel (%p124) target = $region16
        $region15: #{tpu_custom_call.1} parent=11 // pred_region
          _
        $region16: #{tpu_custom_call.1} parent=11 // pred_fallthru
          _
        // Predicated region
        $region17: #{tpu_custom_call.1} parent=11 // pred_check
          %p127 = pneg %p83
        $region18: #{tpu_custom_call.1} parent=11 // pred_check_branch
          %129 = sbr.rel (%p127) target = $region20
        $region19: #{tpu_custom_call.1} parent=11 // pred_region
          _
        $region20: #{tpu_custom_call.1} parent=11 // pred_fallthru
          _
      $region12: #{tpu_custom_call.1} parent=5 // pred_fallthru
        _
      %p130 = scmp.lt.s32.totalorder %s15, 2
      // Predicated region
      $region21: #{tpu_custom_call.1} parent=5 // pred_check
        %p131 = pneg %p130
      $region22: #{tpu_custom_call.1} parent=5 // pred_check_branch
        %133 = sbr.rel (%p131) target = $region24
      $region23: #{tpu_custom_call.1} parent=5 // pred_region
        // Predicated region
        $region25: #{tpu_custom_call.1} parent=23 // pred_check
          %p134 = pneg %p35
        $region26: #{tpu_custom_call.1} parent=23 // pred_check_branch
          %136 = sbr.rel (%p134) target = $region28
        $region27: #{tpu_custom_call.1} parent=23 // pred_region
          %s137 = sand.u32 %s25, 1
          %s138 = scalar_lea.sflag [#allocation3], %s137
          %s139 = sand.u32 %s25, 1
          %s140 = smul.addr %s139, 256
          %s141 = scalar_lea.vmem [#allocation2], %s140
          %143 = vsyncadd %s138, 0
          %s144 = smul.addr %s15, 32
          %s145 = smul.addr %s144, 8
          %s146 = scalar_lea.hbm %s0, %s145
          %s147 = sshll.u32 %s146, 4
          %s148 = int_to_ptr.hbm [resolvable:$true] %s147
          %s149 = sshll.u32 %s141, 4
          %s150 = int_to_ptr.vmem [resolvable:$true] %s149
          %155 = dma.hbm_to_vmem [thread:$0]  %s148, 4096, %s150, %s138, 256, 256, 16
        $region28: #{tpu_custom_call.1} parent=23 // pred_fallthru
          _
      $region24: #{tpu_custom_call.1} parent=5 // pred_fallthru
        _
      %p156 = scmp.le.s32.totalorder 1, %s15
      %p157 = scmp.lt.s32.totalorder %s15, 3
      %p158 = pnand %p156, %p157
      %p159 = pneg %p158
      // Predicated region
      $region29: #{tpu_custom_call.1} parent=5 // pred_check
        _
      $region30: #{tpu_custom_call.1} parent=5 // pred_check_branch
        %161 = sbr.rel (%p158) target = $region32
      $region31: #{tpu_custom_call.1} parent=5 // pred_region
        %s162 = ssub.s32 %s15, 1
        %s163 = sand.u32 %s28, 1
        %s164 = scalar_lea.sflag [#allocation3], %s163
        %s165 = sand.u32 %s28, 1
        %s166 = smul.addr %s165, 256
        %s167 = scalar_lea.vmem [#allocation2], %s166
        // Predicated region
        $region33: #{tpu_custom_call.1} parent=31 // pred_check
          %p168 = pneg %p41
        $region34: #{tpu_custom_call.1} parent=31 // pred_check_branch
          %170 = sbr.rel (%p168) target = $region36
        $region35: #{tpu_custom_call.1} parent=31 // pred_region
          %172 = dma.done %s164, 4096
        $region36: #{tpu_custom_call.1} parent=31 // pred_fallthru
          _
        %s173 = sand.u32 %s28, 1
        %s174 = scalar_lea.sflag [#allocation3], %s173
        %s175 = sand.u32 %s28, 1
        %s176 = smul.addr %s175, 256
        %s177 = scalar_lea.vmem [#allocation2], %s176
        %p178 = pneg %p41
        %p179 = pneg %p38
        %p180 = pneg %p62
        %p181 = pneg %p59
        %p182 = pneg %p83
        %p183 = pneg %p80
        %p184 = pneg %p109
        %p185 = pneg %p106
        %s186 = sand.u32 %s96, 1
        %s187 = scalar_lea.sflag [#allocation4], %s186
        %s188 = sand.u32 %s96, 1
        %s189 = smul.addr %s188, 256
        %s190 = scalar_lea.vmem [#allocation5], %s189
        %v191 = vld [vmem:[%s167] sm:$0xff]
        %v192 = vld [vmem:[%s167 + $0x8] sm:$0xff]
        %v193 = vld [vmem:[%s167 + $0x10] sm:$0xff]
        %v194 = vld [vmem:[%s167 + $0x18] sm:$0xff]
        %v195 = vld [vmem:[%s167 + $0x20] sm:$0xff]
        %v196 = vld [vmem:[%s167 + $0x28] sm:$0xff]
        %v197 = vld [vmem:[%s167 + $0x30] sm:$0xff]
        %v198 = vld [vmem:[%s167 + $0x38] sm:$0xff]
        %v199 = vld [vmem:[%s167 + $0x40] sm:$0xff]
        %v200 = vld [vmem:[%s167 + $0x48] sm:$0xff]
        %v201 = vld [vmem:[%s167 + $0x50] sm:$0xff]
        %v202 = vld [vmem:[%s167 + $0x58] sm:$0xff]
        %v203 = vld [vmem:[%s167 + $0x60] sm:$0xff]
        %v204 = vld [vmem:[%s167 + $0x68] sm:$0xff]
        %v205 = vld [vmem:[%s167 + $0x70] sm:$0xff]
        %v206 = vld [vmem:[%s167 + $0x78] sm:$0xff]
        %v207 = vld [vmem:[%s167 + $0x80] sm:$0xff]
        %v208 = vld [vmem:[%s167 + $0x88] sm:$0xff]
        %v209 = vld [vmem:[%s167 + $0x90] sm:$0xff]
        %v210 = vld [vmem:[%s167 + $0x98] sm:$0xff]
        %v211 = vld [vmem:[%s167 + $0xa0] sm:$0xff]
        %v212 = vld [vmem:[%s167 + $0xa8] sm:$0xff]
        %v213 = vld [vmem:[%s167 + $0xb0] sm:$0xff]
        %v214 = vld [vmem:[%s167 + $0xb8] sm:$0xff]
        %v215 = vld [vmem:[%s167 + $0xc0] sm:$0xff]
        %v216 = vld [vmem:[%s167 + $0xc8] sm:$0xff]
        %v217 = vld [vmem:[%s167 + $0xd0] sm:$0xff]
        %v218 = vld [vmem:[%s167 + $0xd8] sm:$0xff]
        %v219 = vld [vmem:[%s167 + $0xe0] sm:$0xff]
        %v220 = vld [vmem:[%s167 + $0xe8] sm:$0xff]
        %v221 = vld [vmem:[%s167 + $0xf0] sm:$0xff]
        %v222 = vld [vmem:[%s167 + $0xf8] sm:$0xff]
        %v223 = vadd.f32 %v191, %v192
        %224 = vadd.xlane.f32.xlu0 %v223
        %v225 = vpop.xlane.xlu0 %224
        %v226 = vadd.f32 %v193, %v194
        %227 = vadd.xlane.f32.xlu0 %v226
        %v228 = vpop.xlane.xlu0 %227
        %v229 = vadd.f32 %v195, %v196
        %230 = vadd.xlane.f32.xlu0 %v229
        %v231 = vpop.xlane.xlu0 %230
        %v232 = vadd.f32 %v197, %v198
        %233 = vadd.xlane.f32.xlu0 %v232
        %v234 = vpop.xlane.xlu0 %233
        %v235 = vadd.f32 %v199, %v200
        %236 = vadd.xlane.f32.xlu0 %v235
        %v237 = vpop.xlane.xlu0 %236
        %v238 = vadd.f32 %v201, %v202
        %239 = vadd.xlane.f32.xlu0 %v238
        %v240 = vpop.xlane.xlu0 %239
        %v241 = vadd.f32 %v203, %v204
        %242 = vadd.xlane.f32.xlu0 %v241
        %v243 = vpop.xlane.xlu0 %242
        %v244 = vadd.f32 %v205, %v206
        %245 = vadd.xlane.f32.xlu0 %v244
        %v246 = vpop.xlane.xlu0 %245
        %v247 = vadd.f32 %v207, %v208
        %248 = vadd.xlane.f32.xlu0 %v247
        %v249 = vpop.xlane.xlu0 %248
        %v250 = vadd.f32 %v209, %v210
        %251 = vadd.xlane.f32.xlu0 %v250
        %v252 = vpop.xlane.xlu0 %251
        %v253 = vadd.f32 %v211, %v212
        %254 = vadd.xlane.f32.xlu0 %v253
        %v255 = vpop.xlane.xlu0 %254
        %v256 = vadd.f32 %v213, %v214
        %257 = vadd.xlane.f32.xlu0 %v256
        %v258 = vpop.xlane.xlu0 %257
        %v259 = vadd.f32 %v215, %v216
        %260 = vadd.xlane.f32.xlu0 %v259
        %v261 = vpop.xlane.xlu0 %260
        %v262 = vadd.f32 %v217, %v218
        %263 = vadd.xlane.f32.xlu0 %v262
        %v264 = vpop.xlane.xlu0 %263
        %v265 = vadd.f32 %v219, %v220
        %266 = vadd.xlane.f32.xlu0 %v265
        %v267 = vpop.xlane.xlu0 %266
        %v268 = vadd.f32 %v221, %v222
        %269 = vadd.xlane.f32.xlu0 %v268
        %v270 = vpop.xlane.xlu0 %269
        %v271 = vmul.f32 %v225, 0.00390625
        %v272 = vmul.f32 %v228, 0.00390625
        %v273 = vmul.f32 %v231, 0.00390625
        %v274 = vmul.f32 %v234, 0.00390625
        %v275 = vmul.f32 %v237, 0.00390625
        %v276 = vmul.f32 %v240, 0.00390625
        %v277 = vmul.f32 %v243, 0.00390625
        %v278 = vmul.f32 %v246, 0.00390625
        %v279 = vmul.f32 %v249, 0.00390625
        %v280 = vmul.f32 %v252, 0.00390625
        %v281 = vmul.f32 %v255, 0.00390625
        %v282 = vmul.f32 %v258, 0.00390625
        %v283 = vmul.f32 %v261, 0.00390625
        %v284 = vmul.f32 %v264, 0.00390625
        %v285 = vmul.f32 %v267, 0.00390625
        %v286 = vmul.f32 %v270, 0.00390625
        %v287 = vld [vmem:[%s1] sm:$0xff]
        %v288 = vld [vmem:[%s2] sm:$0xff]
        %v289 = vld [vmem:[%s2 + $0x8] sm:$0xff]
        %v290 = vld [vmem:[%s2 + $0x10] sm:$0xff]
        %v291 = vld [vmem:[%s2 + $0x18] sm:$0xff]
        %v292 = vld [vmem:[%s2 + $0x20] sm:$0xff]
        %v293 = vld [vmem:[%s2 + $0x28] sm:$0xff]
        %v294 = vld [vmem:[%s2 + $0x30] sm:$0xff]
        %v295 = vld [vmem:[%s2 + $0x38] sm:$0xff]
        %v296 = vld [vmem:[%s2 + $0x40] sm:$0xff]
        %v297 = vld [vmem:[%s2 + $0x48] sm:$0xff]
        %v298 = vld [vmem:[%s2 + $0x50] sm:$0xff]
        %v299 = vld [vmem:[%s2 + $0x58] sm:$0xff]
        %v300 = vld [vmem:[%s2 + $0x60] sm:$0xff]
        %v301 = vld [vmem:[%s2 + $0x68] sm:$0xff]
        %v302 = vld [vmem:[%s2 + $0x70] sm:$0xff]
        %v303 = vld [vmem:[%s2 + $0x78] sm:$0xff]
        %v304 = vand.u32 %v286, 4294901760
        %305 = vmatpush.msra.mxu0 %v304
        %v306 = vand.u32 %v285, 4294901760
        %307 = vmatpush.msra.mxu0 %v306
        %v308 = vand.u32 %v284, 4294901760
        %309 = vmatpush.msra.mxu0 %v308
        %v310 = vand.u32 %v283, 4294901760
        %311 = vmatpush.msra.mxu0 %v310
        %v312 = vand.u32 %v282, 4294901760
        %313 = vmatpush.msra.mxu0 %v312
        %v314 = vand.u32 %v281, 4294901760
        %315 = vmatpush.msra.mxu0 %v314
        %v316 = vand.u32 %v280, 4294901760
        %317 = vmatpush.msra.mxu0 %v316
        %v318 = vand.u32 %v279, 4294901760
        %319 = vmatpush.msra.mxu0 %v318
        %v320 = vand.u32 %v278, 4294901760
        %321 = vmatpush.msra.mxu0 %v320
        %v322 = vand.u32 %v277, 4294901760
        %323 = vmatpush.msra.mxu0 %v322
        %v324 = vand.u32 %v276, 4294901760
        %325 = vmatpush.msra.mxu0 %v324
        %v326 = vand.u32 %v275, 4294901760
        %327 = vmatpush.msra.mxu0 %v326
        %v328 = vand.u32 %v274, 4294901760
        %329 = vmatpush.msra.mxu0 %v328
        %v330 = vand.u32 %v273, 4294901760
        %331 = vmatpush.msra.mxu0 %v330
        %v332 = vand.u32 %v272, 4294901760
        %333 = vmatpush.msra.mxu0 %v332
        %v334 = vand.u32 %v271, 4294901760
        %335 = vmatpush.msra.mxu0 %v334
        %v336 = vand.u32 %v287, 4294901760
        %v337 = vsub.f32 %v287, %v336
        %v338 = vand.u32 %v337, 4294901760
        %v339 = vsub.f32 %v337, %v338
        %v340 = vand.u32 %v339, 4294901760
        %341 = vmatmul.f32.gmra.mxu0 %v340
        %v342 = vpop.f32.mrf.mxu0
        %v343 = vadd.f32 0.0, %v342
        %344 = vdwg.mxu0
        %v345 = vand.u32 %v286, 4294901760
        %v346 = vsub.f32 %v286, %v345
        %v347 = vand.u32 %v346, 4294901760
        %v348 = vsub.f32 %v346, %v347
        %v349 = vand.u32 %v348, 4294901760
        %350 = vmatpush.msra.mxu0 %v349
        %v351 = vand.u32 %v285, 4294901760
        %v352 = vsub.f32 %v285, %v351
        %v353 = vand.u32 %v352, 4294901760
        %v354 = vsub.f32 %v352, %v353
        %v355 = vand.u32 %v354, 4294901760
        %356 = vmatpush.msra.mxu0 %v355
        %v357 = vand.u32 %v284, 4294901760
        %v358 = vsub.f32 %v284, %v357
        %v359 = vand.u32 %v358, 4294901760
        %v360 = vsub.f32 %v358, %v359
        %v361 = vand.u32 %v360, 4294901760
        %362 = vmatpush.msra.mxu0 %v361
        %v363 = vand.u32 %v283, 4294901760
        %v364 = vsub.f32 %v283, %v363
        %v365 = vand.u32 %v364, 4294901760
        %v366 = vsub.f32 %v364, %v365
        %v367 = vand.u32 %v366, 4294901760
        %368 = vmatpush.msra.mxu0 %v367
        %v369 = vand.u32 %v282, 4294901760
        %v370 = vsub.f32 %v282, %v369
        %v371 = vand.u32 %v370, 4294901760
        %v372 = vsub.f32 %v370, %v371
        %v373 = vand.u32 %v372, 4294901760
        %374 = vmatpush.msra.mxu0 %v373
        %v375 = vand.u32 %v281, 4294901760
        %v376 = vsub.f32 %v281, %v375
        %v377 = vand.u32 %v376, 4294901760
        %v378 = vsub.f32 %v376, %v377
        %v379 = vand.u32 %v378, 4294901760
        %380 = vmatpush.msra.mxu0 %v379
        %v381 = vand.u32 %v280, 4294901760
        %v382 = vsub.f32 %v280, %v381
        %v383 = vand.u32 %v382, 4294901760
        %v384 = vsub.f32 %v382, %v383
        %v385 = vand.u32 %v384, 4294901760
        %386 = vmatpush.msra.mxu0 %v385
        %v387 = vand.u32 %v279, 4294901760
        %v388 = vsub.f32 %v279, %v387
        %v389 = vand.u32 %v388, 4294901760
        %v390 = vsub.f32 %v388, %v389
        %v391 = vand.u32 %v390, 4294901760
        %392 = vmatpush.msra.mxu0 %v391
        %v393 = vand.u32 %v278, 4294901760
        %v394 = vsub.f32 %v278, %v393
        %v395 = vand.u32 %v394, 4294901760
        %v396 = vsub.f32 %v394, %v395
        %v397 = vand.u32 %v396, 4294901760
        %398 = vmatpush.msra.mxu0 %v397
        %v399 = vand.u32 %v277, 4294901760
        %v400 = vsub.f32 %v277, %v399
        %v401 = vand.u32 %v400, 4294901760
        %v402 = vsub.f32 %v400, %v401
        %v403 = vand.u32 %v402, 4294901760
        %404 = vmatpush.msra.mxu0 %v403
        %v405 = vand.u32 %v276, 4294901760
        %v406 = vsub.f32 %v276, %v405
        %v407 = vand.u32 %v406, 4294901760
        %v408 = vsub.f32 %v406, %v407
        %v409 = vand.u32 %v408, 4294901760
        %410 = vmatpush.msra.mxu0 %v409
        %v411 = vand.u32 %v275, 4294901760
        %v412 = vsub.f32 %v275, %v411
        %v413 = vand.u32 %v412, 4294901760
        %v414 = vsub.f32 %v412, %v413
        %v415 = vand.u32 %v414, 4294901760
        %416 = vmatpush.msra.mxu0 %v415
        %v417 = vand.u32 %v274, 4294901760
        %v418 = vsub.f32 %v274, %v417
        %v419 = vand.u32 %v418, 4294901760
        %v420 = vsub.f32 %v418, %v419
        %v421 = vand.u32 %v420, 4294901760
        %422 = vmatpush.msra.mxu0 %v421
        %v423 = vand.u32 %v273, 4294901760
        %v424 = vsub.f32 %v273, %v423
        %v425 = vand.u32 %v424, 4294901760
        %v426 = vsub.f32 %v424, %v425
        %v427 = vand.u32 %v426, 4294901760
        %428 = vmatpush.msra.mxu0 %v427
        %v429 = vand.u32 %v272, 4294901760
        %v430 = vsub.f32 %v272, %v429
        %v431 = vand.u32 %v430, 4294901760
        %v432 = vsub.f32 %v430, %v431
        %v433 = vand.u32 %v432, 4294901760
        %434 = vmatpush.msra.mxu0 %v433
        %v435 = vand.u32 %v271, 4294901760
        %v436 = vsub.f32 %v271, %v435
        %v437 = vand.u32 %v436, 4294901760
        %v438 = vsub.f32 %v436, %v437
        %v439 = vand.u32 %v438, 4294901760
        %440 = vmatpush.msra.mxu0 %v439
        %v441 = vand.u32 %v287, 4294901760
        %442 = vmatmul.f32.gmra.mxu0 %v441
        %v443 = vpop.f32.mrf.mxu0
        %v444 = vadd.f32 %v343, %v443
        %445 = vdwg.mxu0
        %v446 = vand.u32 %v286, 4294901760
        %v447 = vsub.f32 %v286, %v446
        %448 = vmatpush.msra.mxu0 %v447
        %v449 = vand.u32 %v285, 4294901760
        %v450 = vsub.f32 %v285, %v449
        %451 = vmatpush.msra.mxu0 %v450
        %v452 = vand.u32 %v284, 4294901760
        %v453 = vsub.f32 %v284, %v452
        %454 = vmatpush.msra.mxu0 %v453
        %v455 = vand.u32 %v283, 4294901760
        %v456 = vsub.f32 %v283, %v455
        %457 = vmatpush.msra.mxu0 %v456
        %v458 = vand.u32 %v282, 4294901760
        %v459 = vsub.f32 %v282, %v458
        %460 = vmatpush.msra.mxu0 %v459
        %v461 = vand.u32 %v281, 4294901760
        %v462 = vsub.f32 %v281, %v461
        %463 = vmatpush.msra.mxu0 %v462
        %v464 = vand.u32 %v280, 4294901760
        %v465 = vsub.f32 %v280, %v464
        %466 = vmatpush.msra.mxu0 %v465
        %v467 = vand.u32 %v279, 4294901760
        %v468 = vsub.f32 %v279, %v467
        %469 = vmatpush.msra.mxu0 %v468
        %v470 = vand.u32 %v278, 4294901760
        %v471 = vsub.f32 %v278, %v470
        %472 = vmatpush.msra.mxu0 %v471
        %v473 = vand.u32 %v277, 4294901760
        %v474 = vsub.f32 %v277, %v473
        %475 = vmatpush.msra.mxu0 %v474
        %v476 = vand.u32 %v276, 4294901760
        %v477 = vsub.f32 %v276, %v476
        %478 = vmatpush.msra.mxu0 %v477
        %v479 = vand.u32 %v275, 4294901760
        %v480 = vsub.f32 %v275, %v479
        %481 = vmatpush.msra.mxu0 %v480
        %v482 = vand.u32 %v274, 4294901760
        %v483 = vsub.f32 %v274, %v482
        %484 = vmatpush.msra.mxu0 %v483
        %v485 = vand.u32 %v273, 4294901760
        %v486 = vsub.f32 %v273, %v485
        %487 = vmatpush.msra.mxu0 %v486
        %v488 = vand.u32 %v272, 4294901760
        %v489 = vsub.f32 %v272, %v488
        %490 = vmatpush.msra.mxu0 %v489
        %v491 = vand.u32 %v271, 4294901760
        %v492 = vsub.f32 %v271, %v491
        %493 = vmatpush.msra.mxu0 %v492
        %v494 = vand.u32 %v287, 4294901760
        %v495 = vsub.f32 %v287, %v494
        %496 = vmatmul.f32.gmra.mxu0 %v495
        %v497 = vpop.f32.mrf.mxu0
        %v498 = vadd.f32 %v444, %v497
        %499 = vdwg.mxu0
        %v500 = vand.u32 %v286, 4294901760
        %501 = vmatpush.msra.mxu0 %v500
        %v502 = vand.u32 %v285, 4294901760
        %503 = vmatpush.msra.mxu0 %v502
        %v504 = vand.u32 %v284, 4294901760
        %505 = vmatpush.msra.mxu0 %v504
        %v506 = vand.u32 %v283, 4294901760
        %507 = vmatpush.msra.mxu0 %v506
        %v508 = vand.u32 %v282, 4294901760
        %509 = vmatpush.msra.mxu0 %v508
        %v510 = vand.u32 %v281, 4294901760
        %511 = vmatpush.msra.mxu0 %v510
        %v512 = vand.u32 %v280, 4294901760
        %513 = vmatpush.msra.mxu0 %v512
        %v514 = vand.u32 %v279, 4294901760
        %515 = vmatpush.msra.mxu0 %v514
        %v516 = vand.u32 %v278, 4294901760
        %517 = vmatpush.msra.mxu0 %v516
        %v518 = vand.u32 %v277, 4294901760
        %519 = vmatpush.msra.mxu0 %v518
        %v520 = vand.u32 %v276, 4294901760
        %521 = vmatpush.msra.mxu0 %v520
        %v522 = vand.u32 %v275, 4294901760
        %523 = vmatpush.msra.mxu0 %v522
        %v524 = vand.u32 %v274, 4294901760
        %525 = vmatpush.msra.mxu0 %v524
        %v526 = vand.u32 %v273, 4294901760
        %527 = vmatpush.msra.mxu0 %v526
        %v528 = vand.u32 %v272, 4294901760
        %529 = vmatpush.msra.mxu0 %v528
        %v530 = vand.u32 %v271, 4294901760
        %531 = vmatpush.msra.mxu0 %v530
        %v532 = vand.u32 %v287, 4294901760
        %v533 = vsub.f32 %v287, %v532
        %v534 = vand.u32 %v533, 4294901760
        %535 = vmatmul.f32.gmra.mxu0 %v534
        %v536 = vpop.f32.mrf.mxu0
        %v537 = vadd.f32 %v498, %v536
        %538 = vdwg.mxu0
        %v539 = vand.u32 %v286, 4294901760
        %v540 = vsub.f32 %v286, %v539
        %v541 = vand.u32 %v540, 4294901760
        %542 = vmatpush.msra.mxu0 %v541
        %v543 = vand.u32 %v285, 4294901760
        %v544 = vsub.f32 %v285, %v543
        %v545 = vand.u32 %v544, 4294901760
        %546 = vmatpush.msra.mxu0 %v545
        %v547 = vand.u32 %v284, 4294901760
        %v548 = vsub.f32 %v284, %v547
        %v549 = vand.u32 %v548, 4294901760
        %550 = vmatpush.msra.mxu0 %v549
        %v551 = vand.u32 %v283, 4294901760
        %v552 = vsub.f32 %v283, %v551
        %v553 = vand.u32 %v552, 4294901760
        %554 = vmatpush.msra.mxu0 %v553
        %v555 = vand.u32 %v282, 4294901760
        %v556 = vsub.f32 %v282, %v555
        %v557 = vand.u32 %v556, 4294901760
        %558 = vmatpush.msra.mxu0 %v557
        %v559 = vand.u32 %v281, 4294901760
        %v560 = vsub.f32 %v281, %v559
        %v561 = vand.u32 %v560, 4294901760
        %562 = vmatpush.msra.mxu0 %v561
        %v563 = vand.u32 %v280, 4294901760
        %v564 = vsub.f32 %v280, %v563
        %v565 = vand.u32 %v564, 4294901760
        %566 = vmatpush.msra.mxu0 %v565
        %v567 = vand.u32 %v279, 4294901760
        %v568 = vsub.f32 %v279, %v567
        %v569 = vand.u32 %v568, 4294901760
        %570 = vmatpush.msra.mxu0 %v569
        %v571 = vand.u32 %v278, 4294901760
        %v572 = vsub.f32 %v278, %v571
        %v573 = vand.u32 %v572, 4294901760
        %574 = vmatpush.msra.mxu0 %v573
        %v575 = vand.u32 %v277, 4294901760
        %v576 = vsub.f32 %v277, %v575
        %v577 = vand.u32 %v576, 4294901760
        %578 = vmatpush.msra.mxu0 %v577
        %v579 = vand.u32 %v276, 4294901760
        %v580 = vsub.f32 %v276, %v579
        %v581 = vand.u32 %v580, 4294901760
        %582 = vmatpush.msra.mxu0 %v581
        %v583 = vand.u32 %v275, 4294901760
        %v584 = vsub.f32 %v275, %v583
        %v585 = vand.u32 %v584, 4294901760
        %586 = vmatpush.msra.mxu0 %v585
        %v587 = vand.u32 %v274, 4294901760
        %v588 = vsub.f32 %v274, %v587
        %v589 = vand.u32 %v588, 4294901760
        %590 = vmatpush.msra.mxu0 %v589
        %v591 = vand.u32 %v273, 4294901760
        %v592 = vsub.f32 %v273, %v591
        %v593 = vand.u32 %v592, 4294901760
        %594 = vmatpush.msra.mxu0 %v593
        %v595 = vand.u32 %v272, 4294901760
        %v596 = vsub.f32 %v272, %v595
        %v597 = vand.u32 %v596, 4294901760
        %598 = vmatpush.msra.mxu0 %v597
        %v599 = vand.u32 %v271, 4294901760
        %v600 = vsub.f32 %v271, %v599
        %v601 = vand.u32 %v600, 4294901760
        %602 = vmatpush.msra.mxu0 %v601
        %v603 = vand.u32 %v287, 4294901760
        %604 = vmatmul.f32.gmra.mxu0 %v603
        %v605 = vpop.f32.mrf.mxu0
        %v606 = vadd.f32 %v537, %v605
        %607 = vdwg.mxu0
        %v608 = vand.u32 %v286, 4294901760
        %609 = vmatpush.msra.mxu0 %v608
        %v610 = vand.u32 %v285, 4294901760
        %611 = vmatpush.msra.mxu0 %v610
        %v612 = vand.u32 %v284, 4294901760
        %613 = vmatpush.msra.mxu0 %v612
        %v614 = vand.u32 %v283, 4294901760
        %615 = vmatpush.msra.mxu0 %v614
        %v616 = vand.u32 %v282, 4294901760
        %617 = vmatpush.msra.mxu0 %v616
        %v618 = vand.u32 %v281, 4294901760
        %619 = vmatpush.msra.mxu0 %v618
        %v620 = vand.u32 %v280, 4294901760
        %621 = vmatpush.msra.mxu0 %v620
        %v622 = vand.u32 %v279, 4294901760
        %623 = vmatpush.msra.mxu0 %v622
        %v624 = vand.u32 %v278, 4294901760
        %625 = vmatpush.msra.mxu0 %v624
        %v626 = vand.u32 %v277, 4294901760
        %627 = vmatpush.msra.mxu0 %v626
        %v628 = vand.u32 %v276, 4294901760
        %629 = vmatpush.msra.mxu0 %v628
        %v630 = vand.u32 %v275, 4294901760
        %631 = vmatpush.msra.mxu0 %v630
        %v632 = vand.u32 %v274, 4294901760
        %633 = vmatpush.msra.mxu0 %v632
        %v634 = vand.u32 %v273, 4294901760
        %635 = vmatpush.msra.mxu0 %v634
        %v636 = vand.u32 %v272, 4294901760
        %637 = vmatpush.msra.mxu0 %v636
        %v638 = vand.u32 %v271, 4294901760
        %639 = vmatpush.msra.mxu0 %v638
        %v640 = vand.u32 %v287, 4294901760
        %641 = vmatmul.f32.gmra.mxu0 %v640
        %v642 = vpop.f32.mrf.mxu0
        %v643 = vadd.f32 %v606, %v642
        %644 = vdwg.mxu0
        %v645 = vmax.f32 %v643, 0.0
        %vm646 = vcmask 64512
        %v648 = vsel %vm646, %v288, 0
        %v651 = vsel %vm646, %v289, 0
        %v654 = vsel %vm646, %v290, 0
        %v657 = vsel %vm646, %v291, 0
        %v660 = vsel %vm646, %v292, 0
        %v663 = vsel %vm646, %v293, 0
        %v666 = vsel %vm646, %v294, 0
        %v669 = vsel %vm646, %v295, 0
        %v672 = vsel %vm646, %v296, 0
        %v675 = vsel %vm646, %v297, 0
        %v678 = vsel %vm646, %v298, 0
        %v681 = vsel %vm646, %v299, 0
        %v684 = vsel %vm646, %v300, 0
        %v687 = vsel %vm646, %v301, 0
        %v690 = vsel %vm646, %v302, 0
        %v693 = vsel %vm646, %v303, 0
        %695 = vmatpush.msra.mxu0 0.0
        %696 = vmatpush.msra.mxu0 0.0
        %697 = vmatpush.msra.mxu0 0.0
        %698 = vmatpush.msra.mxu0 0.0
        %699 = vmatpush.msra.mxu0 0.0
        %700 = vmatpush.msra.mxu0 0.0
        %701 = vmatpush.msra.mxu0 0.0
        %702 = vmatpush.msra.mxu0 0.0
        %703 = vmatpush.msra.mxu0 0.0
        %704 = vmatpush.msra.mxu0 0.0
        %705 = vmatpush.msra.mxu0 0.0
        %706 = vmatpush.msra.mxu0 0.0
        %707 = vmatpush.msra.mxu0 0.0
        %708 = vmatpush.msra.mxu0 0.0
        %709 = vmatpush.msra.mxu0 0.0
        %v710 = vand.u32 %v645, 4294901760
        %711 = vmatpush.msra.mxu0 %v710
        %v712 = vand.u32 %v648, 4294901760
        %v713 = vsub.f32 %v648, %v712
        %v714 = vand.u32 %v713, 4294901760
        %v715 = vsub.f32 %v713, %v714
        %v716 = vand.u32 %v715, 4294901760
        %717 = vmatmul.f32.gmra.mxu0 %v716
        %v718 = vpop.f32.mrf.mxu0
        %v719 = vadd.f32 0.0, %v718
        %v720 = vand.u32 %v651, 4294901760
        %v721 = vsub.f32 %v651, %v720
        %v722 = vand.u32 %v721, 4294901760
        %v723 = vsub.f32 %v721, %v722
        %v724 = vand.u32 %v723, 4294901760
        %725 = vmatmul.f32.gmra.mxu0 %v724
        %v726 = vpop.f32.mrf.mxu0
        %v727 = vadd.f32 0.0, %v726
        %v728 = vand.u32 %v654, 4294901760
        %v729 = vsub.f32 %v654, %v728
        %v730 = vand.u32 %v729, 4294901760
        %v731 = vsub.f32 %v729, %v730
        %v732 = vand.u32 %v731, 4294901760
        %733 = vmatmul.f32.gmra.mxu0 %v732
        %v734 = vpop.f32.mrf.mxu0
        %v735 = vadd.f32 0.0, %v734
        %v736 = vand.u32 %v657, 4294901760
        %v737 = vsub.f32 %v657, %v736
        %v738 = vand.u32 %v737, 4294901760
        %v739 = vsub.f32 %v737, %v738
        %v740 = vand.u32 %v739, 4294901760
        %741 = vmatmul.f32.gmra.mxu0 %v740
        %v742 = vpop.f32.mrf.mxu0
        %v743 = vadd.f32 0.0, %v742
        %v744 = vand.u32 %v660, 4294901760
        %v745 = vsub.f32 %v660, %v744
        %v746 = vand.u32 %v745, 4294901760
        %v747 = vsub.f32 %v745, %v746
        %v748 = vand.u32 %v747, 4294901760
        %749 = vmatmul.f32.gmra.mxu0 %v748
        %v750 = vpop.f32.mrf.mxu0
        %v751 = vadd.f32 0.0, %v750
        %v752 = vand.u32 %v663, 4294901760
        %v753 = vsub.f32 %v663, %v752
        %v754 = vand.u32 %v753, 4294901760
        %v755 = vsub.f32 %v753, %v754
        %v756 = vand.u32 %v755, 4294901760
        %757 = vmatmul.f32.gmra.mxu0 %v756
        %v758 = vpop.f32.mrf.mxu0
        %v759 = vadd.f32 0.0, %v758
        %v760 = vand.u32 %v666, 4294901760
        %v761 = vsub.f32 %v666, %v760
        %v762 = vand.u32 %v761, 4294901760
        %v763 = vsub.f32 %v761, %v762
        %v764 = vand.u32 %v763, 4294901760
        %765 = vmatmul.f32.gmra.mxu0 %v764
        %v766 = vpop.f32.mrf.mxu0
        %v767 = vadd.f32 0.0, %v766
        %v768 = vand.u32 %v669, 4294901760
        %v769 = vsub.f32 %v669, %v768
        %v770 = vand.u32 %v769, 4294901760
        %v771 = vsub.f32 %v769, %v770
        %v772 = vand.u32 %v771, 4294901760
        %773 = vmatmul.f32.gmra.mxu0 %v772
        %v774 = vpop.f32.mrf.mxu0
        %v775 = vadd.f32 0.0, %v774
        %v776 = vand.u32 %v672, 4294901760
        %v777 = vsub.f32 %v672, %v776
        %v778 = vand.u32 %v777, 4294901760
        %v779 = vsub.f32 %v777, %v778
        %v780 = vand.u32 %v779, 4294901760
        %781 = vmatmul.f32.gmra.mxu0 %v780
        %v782 = vpop.f32.mrf.mxu0
        %v783 = vadd.f32 0.0, %v782
        %v784 = vand.u32 %v675, 4294901760
        %v785 = vsub.f32 %v675, %v784
        %v786 = vand.u32 %v785, 4294901760
        %v787 = vsub.f32 %v785, %v786
        %v788 = vand.u32 %v787, 4294901760
        %789 = vmatmul.f32.gmra.mxu0 %v788
        %v790 = vpop.f32.mrf.mxu0
        %v791 = vadd.f32 0.0, %v790
        %v792 = vand.u32 %v678, 4294901760
        %v793 = vsub.f32 %v678, %v792
        %v794 = vand.u32 %v793, 4294901760
        %v795 = vsub.f32 %v793, %v794
        %v796 = vand.u32 %v795, 4294901760
        %797 = vmatmul.f32.gmra.mxu0 %v796
        %v798 = vpop.f32.mrf.mxu0
        %v799 = vadd.f32 0.0, %v798
        %v800 = vand.u32 %v681, 4294901760
        %v801 = vsub.f32 %v681, %v800
        %v802 = vand.u32 %v801, 4294901760
        %v803 = vsub.f32 %v801, %v802
        %v804 = vand.u32 %v803, 4294901760
        %805 = vmatmul.f32.gmra.mxu0 %v804
        %v806 = vpop.f32.mrf.mxu0
        %v807 = vadd.f32 0.0, %v806
        %v808 = vand.u32 %v684, 4294901760
        %v809 = vsub.f32 %v684, %v808
        %v810 = vand.u32 %v809, 4294901760
        %v811 = vsub.f32 %v809, %v810
        %v812 = vand.u32 %v811, 4294901760
        %813 = vmatmul.f32.gmra.mxu0 %v812
        %v814 = vpop.f32.mrf.mxu0
        %v815 = vadd.f32 0.0, %v814
        %v816 = vand.u32 %v687, 4294901760
        %v817 = vsub.f32 %v687, %v816
        %v818 = vand.u32 %v817, 4294901760
        %v819 = vsub.f32 %v817, %v818
        %v820 = vand.u32 %v819, 4294901760
        %821 = vmatmul.f32.gmra.mxu0 %v820
        %v822 = vpop.f32.mrf.mxu0
        %v823 = vadd.f32 0.0, %v822
        %v824 = vand.u32 %v690, 4294901760
        %v825 = vsub.f32 %v690, %v824
        %v826 = vand.u32 %v825, 4294901760
        %v827 = vsub.f32 %v825, %v826
        %v828 = vand.u32 %v827, 4294901760
        %829 = vmatmul.f32.gmra.mxu0 %v828
        %v830 = vpop.f32.mrf.mxu0
        %v831 = vadd.f32 0.0, %v830
        %v832 = vand.u32 %v693, 4294901760
        %v833 = vsub.f32 %v693, %v832
        %v834 = vand.u32 %v833, 4294901760
        %v835 = vsub.f32 %v833, %v834
        %v836 = vand.u32 %v835, 4294901760
        %837 = vmatmul.f32.gmra.mxu0 %v836
        %v838 = vpop.f32.mrf.mxu0
        %v839 = vadd.f32 0.0, %v838
        %840 = vdwg.mxu0
        %841 = vmatpush.msra.mxu0 0.0
        %842 = vmatpush.msra.mxu0 0.0
        %843 = vmatpush.msra.mxu0 0.0
        %844 = vmatpush.msra.mxu0 0.0
        %845 = vmatpush.msra.mxu0 0.0
        %846 = vmatpush.msra.mxu0 0.0
        %847 = vmatpush.msra.mxu0 0.0
        %848 = vmatpush.msra.mxu0 0.0
        %849 = vmatpush.msra.mxu0 0.0
        %850 = vmatpush.msra.mxu0 0.0
        %851 = vmatpush.msra.mxu0 0.0
        %852 = vmatpush.msra.mxu0 0.0
        %853 = vmatpush.msra.mxu0 0.0
        %854 = vmatpush.msra.mxu0 0.0
        %855 = vmatpush.msra.mxu0 0.0
        %v856 = vand.u32 %v645, 4294901760
        %v857 = vsub.f32 %v645, %v856
        %v858 = vand.u32 %v857, 4294901760
        %v859 = vsub.f32 %v857, %v858
        %v860 = vand.u32 %v859, 4294901760
        %861 = vmatpush.msra.mxu0 %v860
        %v862 = vand.u32 %v648, 4294901760
        %863 = vmatmul.f32.gmra.mxu0 %v862
        %v864 = vpop.f32.mrf.mxu0
        %v865 = vadd.f32 %v719, %v864
        %v866 = vand.u32 %v651, 4294901760
        %867 = vmatmul.f32.gmra.mxu0 %v866
        %v868 = vpop.f32.mrf.mxu0
        %v869 = vadd.f32 %v727, %v868
        %v870 = vand.u32 %v654, 4294901760
        %871 = vmatmul.f32.gmra.mxu0 %v870
        %v872 = vpop.f32.mrf.mxu0
        %v873 = vadd.f32 %v735, %v872
        %v874 = vand.u32 %v657, 4294901760
        %875 = vmatmul.f32.gmra.mxu0 %v874
        %v876 = vpop.f32.mrf.mxu0
        %v877 = vadd.f32 %v743, %v876
        %v878 = vand.u32 %v660, 4294901760
        %879 = vmatmul.f32.gmra.mxu0 %v878
        %v880 = vpop.f32.mrf.mxu0
        %v881 = vadd.f32 %v751, %v880
        %v882 = vand.u32 %v663, 4294901760
        %883 = vmatmul.f32.gmra.mxu0 %v882
        %v884 = vpop.f32.mrf.mxu0
        %v885 = vadd.f32 %v759, %v884
        %v886 = vand.u32 %v666, 4294901760
        %887 = vmatmul.f32.gmra.mxu0 %v886
        %v888 = vpop.f32.mrf.mxu0
        %v889 = vadd.f32 %v767, %v888
        %v890 = vand.u32 %v669, 4294901760
        %891 = vmatmul.f32.gmra.mxu0 %v890
        %v892 = vpop.f32.mrf.mxu0
        %v893 = vadd.f32 %v775, %v892
        %v894 = vand.u32 %v672, 4294901760
        %895 = vmatmul.f32.gmra.mxu0 %v894
        %v896 = vpop.f32.mrf.mxu0
        %v897 = vadd.f32 %v783, %v896
        %v898 = vand.u32 %v675, 4294901760
        %899 = vmatmul.f32.gmra.mxu0 %v898
        %v900 = vpop.f32.mrf.mxu0
        %v901 = vadd.f32 %v791, %v900
        %v902 = vand.u32 %v678, 4294901760
        %903 = vmatmul.f32.gmra.mxu0 %v902
        %v904 = vpop.f32.mrf.mxu0
        %v905 = vadd.f32 %v799, %v904
        %v906 = vand.u32 %v681, 4294901760
        %907 = vmatmul.f32.gmra.mxu0 %v906
        %v908 = vpop.f32.mrf.mxu0
        %v909 = vadd.f32 %v807, %v908
        %v910 = vand.u32 %v684, 4294901760
        %911 = vmatmul.f32.gmra.mxu0 %v910
        %v912 = vpop.f32.mrf.mxu0
        %v913 = vadd.f32 %v815, %v912
        %v914 = vand.u32 %v687, 4294901760
        %915 = vmatmul.f32.gmra.mxu0 %v914
        %v916 = vpop.f32.mrf.mxu0
        %v917 = vadd.f32 %v823, %v916
        %v918 = vand.u32 %v690, 4294901760
        %919 = vmatmul.f32.gmra.mxu0 %v918
        %v920 = vpop.f32.mrf.mxu0
        %v921 = vadd.f32 %v831, %v920
        %v922 = vand.u32 %v693, 4294901760
        %923 = vmatmul.f32.gmra.mxu0 %v922
        %v924 = vpop.f32.mrf.mxu0
        %v925 = vadd.f32 %v839, %v924
        %926 = vdwg.mxu0
        %927 = vmatpush.msra.mxu0 0.0
        %928 = vmatpush.msra.mxu0 0.0
        %929 = vmatpush.msra.mxu0 0.0
        %930 = vmatpush.msra.mxu0 0.0
        %931 = vmatpush.msra.mxu0 0.0
        %932 = vmatpush.msra.mxu0 0.0
        %933 = vmatpush.msra.mxu0 0.0
        %934 = vmatpush.msra.mxu0 0.0
        %935 = vmatpush.msra.mxu0 0.0
        %936 = vmatpush.msra.mxu0 0.0
        %937 = vmatpush.msra.mxu0 0.0
        %938 = vmatpush.msra.mxu0 0.0
        %939 = vmatpush.msra.mxu0 0.0
        %940 = vmatpush.msra.mxu0 0.0
        %941 = vmatpush.msra.mxu0 0.0
        %v942 = vand.u32 %v645, 4294901760
        %v943 = vsub.f32 %v645, %v942
        %944 = vmatpush.msra.mxu0 %v943
        %v945 = vand.u32 %v648, 4294901760
        %v946 = vsub.f32 %v648, %v945
        %947 = vmatmul.f32.gmra.mxu0 %v946
        %v948 = vpop.f32.mrf.mxu0
        %v949 = vadd.f32 %v865, %v948
        %v950 = vand.u32 %v651, 4294901760
        %v951 = vsub.f32 %v651, %v950
        %952 = vmatmul.f32.gmra.mxu0 %v951
        %v953 = vpop.f32.mrf.mxu0
        %v954 = vadd.f32 %v869, %v953
        %v955 = vand.u32 %v654, 4294901760
        %v956 = vsub.f32 %v654, %v955
        %957 = vmatmul.f32.gmra.mxu0 %v956
        %v958 = vpop.f32.mrf.mxu0
        %v959 = vadd.f32 %v873, %v958
        %v960 = vand.u32 %v657, 4294901760
        %v961 = vsub.f32 %v657, %v960
        %962 = vmatmul.f32.gmra.mxu0 %v961
        %v963 = vpop.f32.mrf.mxu0
        %v964 = vadd.f32 %v877, %v963
        %v965 = vand.u32 %v660, 4294901760
        %v966 = vsub.f32 %v660, %v965
        %967 = vmatmul.f32.gmra.mxu0 %v966
        %v968 = vpop.f32.mrf.mxu0
        %v969 = vadd.f32 %v881, %v968
        %v970 = vand.u32 %v663, 4294901760
        %v971 = vsub.f32 %v663, %v970
        %972 = vmatmul.f32.gmra.mxu0 %v971
        %v973 = vpop.f32.mrf.mxu0
        %v974 = vadd.f32 %v885, %v973
        %v975 = vand.u32 %v666, 4294901760
        %v976 = vsub.f32 %v666, %v975
        %977 = vmatmul.f32.gmra.mxu0 %v976
        %v978 = vpop.f32.mrf.mxu0
        %v979 = vadd.f32 %v889, %v978
        %v980 = vand.u32 %v669, 4294901760
        %v981 = vsub.f32 %v669, %v980
        %982 = vmatmul.f32.gmra.mxu0 %v981
        %v983 = vpop.f32.mrf.mxu0
        %v984 = vadd.f32 %v893, %v983
        %v985 = vand.u32 %v672, 4294901760
        %v986 = vsub.f32 %v672, %v985
        %987 = vmatmul.f32.gmra.mxu0 %v986
        %v988 = vpop.f32.mrf.mxu0
        %v989 = vadd.f32 %v897, %v988
        %v990 = vand.u32 %v675, 4294901760
        %v991 = vsub.f32 %v675, %v990
        %992 = vmatmul.f32.gmra.mxu0 %v991
        %v993 = vpop.f32.mrf.mxu0
        %v994 = vadd.f32 %v901, %v993
        %v995 = vand.u32 %v678, 4294901760
        %v996 = vsub.f32 %v678, %v995
        %997 = vmatmul.f32.gmra.mxu0 %v996
        %v998 = vpop.f32.mrf.mxu0
        %v999 = vadd.f32 %v905, %v998
        %v1000 = vand.u32 %v681, 4294901760
        %v1001 = vsub.f32 %v681, %v1000
        %1002 = vmatmul.f32.gmra.mxu0 %v1001
        %v1003 = vpop.f32.mrf.mxu0
        %v1004 = vadd.f32 %v909, %v1003
        %v1005 = vand.u32 %v684, 4294901760
        %v1006 = vsub.f32 %v684, %v1005
        %1007 = vmatmul.f32.gmra.mxu0 %v1006
        %v1008 = vpop.f32.mrf.mxu0
        %v1009 = vadd.f32 %v913, %v1008
        %v1010 = vand.u32 %v687, 4294901760
        %v1011 = vsub.f32 %v687, %v1010
        %1012 = vmatmul.f32.gmra.mxu0 %v1011
        %v1013 = vpop.f32.mrf.mxu0
        %v1014 = vadd.f32 %v917, %v1013
        %v1015 = vand.u32 %v690, 4294901760
        %v1016 = vsub.f32 %v690, %v1015
        %1017 = vmatmul.f32.gmra.mxu0 %v1016
        %v1018 = vpop.f32.mrf.mxu0
        %v1019 = vadd.f32 %v921, %v1018
        %v1020 = vand.u32 %v693, 4294901760
        %v1021 = vsub.f32 %v693, %v1020
        %1022 = vmatmul.f32.gmra.mxu0 %v1021
        %v1023 = vpop.f32.mrf.mxu0
        %v1024 = vadd.f32 %v925, %v1023
        %1025 = vdwg.mxu0
        %1026 = vmatpush.msra.mxu0 0.0
        %1027 = vmatpush.msra.mxu0 0.0
        %1028 = vmatpush.msra.mxu0 0.0
        %1029 = vmatpush.msra.mxu0 0.0
        %1030 = vmatpush.msra.mxu0 0.0
        %1031 = vmatpush.msra.mxu0 0.0
        %1032 = vmatpush.msra.mxu0 0.0
        %1033 = vmatpush.msra.mxu0 0.0
        %1034 = vmatpush.msra.mxu0 0.0
        %1035 = vmatpush.msra.mxu0 0.0
        %1036 = vmatpush.msra.mxu0 0.0
        %1037 = vmatpush.msra.mxu0 0.0
        %1038 = vmatpush.msra.mxu0 0.0
        %1039 = vmatpush.msra.mxu0 0.0
        %1040 = vmatpush.msra.mxu0 0.0
        %v1041 = vand.u32 %v645, 4294901760
        %1042 = vmatpush.msra.mxu0 %v1041
        %v1043 = vand.u32 %v648, 4294901760
        %v1044 = vsub.f32 %v648, %v1043
        %v1045 = vand.u32 %v1044, 4294901760
        %1046 = vmatmul.f32.gmra.mxu0 %v1045
        %v1047 = vpop.f32.mrf.mxu0
        %v1048 = vadd.f32 %v949, %v1047
        %v1049 = vand.u32 %v651, 4294901760
        %v1050 = vsub.f32 %v651, %v1049
        %v1051 = vand.u32 %v1050, 4294901760
        %1052 = vmatmul.f32.gmra.mxu0 %v1051
        %v1053 = vpop.f32.mrf.mxu0
        %v1054 = vadd.f32 %v954, %v1053
        %v1055 = vand.u32 %v654, 4294901760
        %v1056 = vsub.f32 %v654, %v1055
        %v1057 = vand.u32 %v1056, 4294901760
        %1058 = vmatmul.f32.gmra.mxu0 %v1057
        %v1059 = vpop.f32.mrf.mxu0
        %v1060 = vadd.f32 %v959, %v1059
        %v1061 = vand.u32 %v657, 4294901760
        %v1062 = vsub.f32 %v657, %v1061
        %v1063 = vand.u32 %v1062, 4294901760
        %1064 = vmatmul.f32.gmra.mxu0 %v1063
        %v1065 = vpop.f32.mrf.mxu0
        %v1066 = vadd.f32 %v964, %v1065
        %v1067 = vand.u32 %v660, 4294901760
        %v1068 = vsub.f32 %v660, %v1067
        %v1069 = vand.u32 %v1068, 4294901760
        %1070 = vmatmul.f32.gmra.mxu0 %v1069
        %v1071 = vpop.f32.mrf.mxu0
        %v1072 = vadd.f32 %v969, %v1071
        %v1073 = vand.u32 %v663, 4294901760
        %v1074 = vsub.f32 %v663, %v1073
        %v1075 = vand.u32 %v1074, 4294901760
        %1076 = vmatmul.f32.gmra.mxu0 %v1075
        %v1077 = vpop.f32.mrf.mxu0
        %v1078 = vadd.f32 %v974, %v1077
        %v1079 = vand.u32 %v666, 4294901760
        %v1080 = vsub.f32 %v666, %v1079
        %v1081 = vand.u32 %v1080, 4294901760
        %1082 = vmatmul.f32.gmra.mxu0 %v1081
        %v1083 = vpop.f32.mrf.mxu0
        %v1084 = vadd.f32 %v979, %v1083
        %v1085 = vand.u32 %v669, 4294901760
        %v1086 = vsub.f32 %v669, %v1085
        %v1087 = vand.u32 %v1086, 4294901760
        %1088 = vmatmul.f32.gmra.mxu0 %v1087
        %v1089 = vpop.f32.mrf.mxu0
        %v1090 = vadd.f32 %v984, %v1089
        %v1091 = vand.u32 %v672, 4294901760
        %v1092 = vsub.f32 %v672, %v1091
        %v1093 = vand.u32 %v1092, 4294901760
        %1094 = vmatmul.f32.gmra.mxu0 %v1093
        %v1095 = vpop.f32.mrf.mxu0
        %v1096 = vadd.f32 %v989, %v1095
        %v1097 = vand.u32 %v675, 4294901760
        %v1098 = vsub.f32 %v675, %v1097
        %v1099 = vand.u32 %v1098, 4294901760
        %1100 = vmatmul.f32.gmra.mxu0 %v1099
        %v1101 = vpop.f32.mrf.mxu0
        %v1102 = vadd.f32 %v994, %v1101
        %v1103 = vand.u32 %v678, 4294901760
        %v1104 = vsub.f32 %v678, %v1103
        %v1105 = vand.u32 %v1104, 4294901760
        %1106 = vmatmul.f32.gmra.mxu0 %v1105
        %v1107 = vpop.f32.mrf.mxu0
        %v1108 = vadd.f32 %v999, %v1107
        %v1109 = vand.u32 %v681, 4294901760
        %v1110 = vsub.f32 %v681, %v1109
        %v1111 = vand.u32 %v1110, 4294901760
        %1112 = vmatmul.f32.gmra.mxu0 %v1111
        %v1113 = vpop.f32.mrf.mxu0
        %v1114 = vadd.f32 %v1004, %v1113
        %v1115 = vand.u32 %v684, 4294901760
        %v1116 = vsub.f32 %v684, %v1115
        %v1117 = vand.u32 %v1116, 4294901760
        %1118 = vmatmul.f32.gmra.mxu0 %v1117
        %v1119 = vpop.f32.mrf.mxu0
        %v1120 = vadd.f32 %v1009, %v1119
        %v1121 = vand.u32 %v687, 4294901760
        %v1122 = vsub.f32 %v687, %v1121
        %v1123 = vand.u32 %v1122, 4294901760
        %1124 = vmatmul.f32.gmra.mxu0 %v1123
        %v1125 = vpop.f32.mrf.mxu0
        %v1126 = vadd.f32 %v1014, %v1125
        %v1127 = vand.u32 %v690, 4294901760
        %v1128 = vsub.f32 %v690, %v1127
        %v1129 = vand.u32 %v1128, 4294901760
        %1130 = vmatmul.f32.gmra.mxu0 %v1129
        %v1131 = vpop.f32.mrf.mxu0
        %v1132 = vadd.f32 %v1019, %v1131
        %v1133 = vand.u32 %v693, 4294901760
        %v1134 = vsub.f32 %v693, %v1133
        %v1135 = vand.u32 %v1134, 4294901760
        %1136 = vmatmul.f32.gmra.mxu0 %v1135
        %v1137 = vpop.f32.mrf.mxu0
        %v1138 = vadd.f32 %v1024, %v1137
        %1139 = vdwg.mxu0
        %1140 = vmatpush.msra.mxu0 0.0
        %1141 = vmatpush.msra.mxu0 0.0
        %1142 = vmatpush.msra.mxu0 0.0
        %1143 = vmatpush.msra.mxu0 0.0
        %1144 = vmatpush.msra.mxu0 0.0
        %1145 = vmatpush.msra.mxu0 0.0
        %1146 = vmatpush.msra.mxu0 0.0
        %1147 = vmatpush.msra.mxu0 0.0
        %1148 = vmatpush.msra.mxu0 0.0
        %1149 = vmatpush.msra.mxu0 0.0
        %1150 = vmatpush.msra.mxu0 0.0
        %1151 = vmatpush.msra.mxu0 0.0
        %1152 = vmatpush.msra.mxu0 0.0
        %1153 = vmatpush.msra.mxu0 0.0
        %1154 = vmatpush.msra.mxu0 0.0
        %v1155 = vand.u32 %v645, 4294901760
        %v1156 = vsub.f32 %v645, %v1155
        %v1157 = vand.u32 %v1156, 4294901760
        %1158 = vmatpush.msra.mxu0 %v1157
        %v1159 = vand.u32 %v648, 4294901760
        %1160 = vmatmul.f32.gmra.mxu0 %v1159
        %v1161 = vpop.f32.mrf.mxu0
        %v1162 = vadd.f32 %v1048, %v1161
        %v1163 = vand.u32 %v651, 4294901760
        %1164 = vmatmul.f32.gmra.mxu0 %v1163
        %v1165 = vpop.f32.mrf.mxu0
        %v1166 = vadd.f32 %v1054, %v1165
        %v1167 = vand.u32 %v654, 4294901760
        %1168 = vmatmul.f32.gmra.mxu0 %v1167
        %v1169 = vpop.f32.mrf.mxu0
        %v1170 = vadd.f32 %v1060, %v1169
        %v1171 = vand.u32 %v657, 4294901760
        %1172 = vmatmul.f32.gmra.mxu0 %v1171
        %v1173 = vpop.f32.mrf.mxu0
        %v1174 = vadd.f32 %v1066, %v1173
        %v1175 = vand.u32 %v660, 4294901760
        %1176 = vmatmul.f32.gmra.mxu0 %v1175
        %v1177 = vpop.f32.mrf.mxu0
        %v1178 = vadd.f32 %v1072, %v1177
        %v1179 = vand.u32 %v663, 4294901760
        %1180 = vmatmul.f32.gmra.mxu0 %v1179
        %v1181 = vpop.f32.mrf.mxu0
        %v1182 = vadd.f32 %v1078, %v1181
        %v1183 = vand.u32 %v666, 4294901760
        %1184 = vmatmul.f32.gmra.mxu0 %v1183
        %v1185 = vpop.f32.mrf.mxu0
        %v1186 = vadd.f32 %v1084, %v1185
        %v1187 = vand.u32 %v669, 4294901760
        %1188 = vmatmul.f32.gmra.mxu0 %v1187
        %v1189 = vpop.f32.mrf.mxu0
        %v1190 = vadd.f32 %v1090, %v1189
        %v1191 = vand.u32 %v672, 4294901760
        %1192 = vmatmul.f32.gmra.mxu0 %v1191
        %v1193 = vpop.f32.mrf.mxu0
        %v1194 = vadd.f32 %v1096, %v1193
        %v1195 = vand.u32 %v675, 4294901760
        %1196 = vmatmul.f32.gmra.mxu0 %v1195
        %v1197 = vpop.f32.mrf.mxu0
        %v1198 = vadd.f32 %v1102, %v1197
        %v1199 = vand.u32 %v678, 4294901760
        %1200 = vmatmul.f32.gmra.mxu0 %v1199
        %v1201 = vpop.f32.mrf.mxu0
        %v1202 = vadd.f32 %v1108, %v1201
        %v1203 = vand.u32 %v681, 4294901760
        %1204 = vmatmul.f32.gmra.mxu0 %v1203
        %v1205 = vpop.f32.mrf.mxu0
        %v1206 = vadd.f32 %v1114, %v1205
        %v1207 = vand.u32 %v684, 4294901760
        %1208 = vmatmul.f32.gmra.mxu0 %v1207
        %v1209 = vpop.f32.mrf.mxu0
        %v1210 = vadd.f32 %v1120, %v1209
        %v1211 = vand.u32 %v687, 4294901760
        %1212 = vmatmul.f32.gmra.mxu0 %v1211
        %v1213 = vpop.f32.mrf.mxu0
        %v1214 = vadd.f32 %v1126, %v1213
        %v1215 = vand.u32 %v690, 4294901760
        %1216 = vmatmul.f32.gmra.mxu0 %v1215
        %v1217 = vpop.f32.mrf.mxu0
        %v1218 = vadd.f32 %v1132, %v1217
        %v1219 = vand.u32 %v693, 4294901760
        %1220 = vmatmul.f32.gmra.mxu0 %v1219
        %v1221 = vpop.f32.mrf.mxu0
        %v1222 = vadd.f32 %v1138, %v1221
        %1223 = vdwg.mxu0
        %1224 = vmatpush.msra.mxu0 0.0
        %1225 = vmatpush.msra.mxu0 0.0
        %1226 = vmatpush.msra.mxu0 0.0
        %1227 = vmatpush.msra.mxu0 0.0
        %1228 = vmatpush.msra.mxu0 0.0
        %1229 = vmatpush.msra.mxu0 0.0
        %1230 = vmatpush.msra.mxu0 0.0
        %1231 = vmatpush.msra.mxu0 0.0
        %1232 = vmatpush.msra.mxu0 0.0
        %1233 = vmatpush.msra.mxu0 0.0
        %1234 = vmatpush.msra.mxu0 0.0
        %1235 = vmatpush.msra.mxu0 0.0
        %1236 = vmatpush.msra.mxu0 0.0
        %1237 = vmatpush.msra.mxu0 0.0
        %1238 = vmatpush.msra.mxu0 0.0
        %v1239 = vand.u32 %v645, 4294901760
        %1240 = vmatpush.msra.mxu0 %v1239
        %v1241 = vand.u32 %v648, 4294901760
        %1242 = vmatmul.f32.gmra.mxu0 %v1241
        %v1243 = vpop.f32.mrf.mxu0
        %v1244 = vadd.f32 %v1162, %v1243
        %v1245 = vand.u32 %v651, 4294901760
        %1246 = vmatmul.f32.gmra.mxu0 %v1245
        %v1247 = vpop.f32.mrf.mxu0
        %v1248 = vadd.f32 %v1166, %v1247
        %v1249 = vand.u32 %v654, 4294901760
        %1250 = vmatmul.f32.gmra.mxu0 %v1249
        %v1251 = vpop.f32.mrf.mxu0
        %v1252 = vadd.f32 %v1170, %v1251
        %v1253 = vand.u32 %v657, 4294901760
        %1254 = vmatmul.f32.gmra.mxu0 %v1253
        %v1255 = vpop.f32.mrf.mxu0
        %v1256 = vadd.f32 %v1174, %v1255
        %v1257 = vand.u32 %v660, 4294901760
        %1258 = vmatmul.f32.gmra.mxu0 %v1257
        %v1259 = vpop.f32.mrf.mxu0
        %v1260 = vadd.f32 %v1178, %v1259
        %v1261 = vand.u32 %v663, 4294901760
        %1262 = vmatmul.f32.gmra.mxu0 %v1261
        %v1263 = vpop.f32.mrf.mxu0
        %v1264 = vadd.f32 %v1182, %v1263
        %v1265 = vand.u32 %v666, 4294901760
        %1266 = vmatmul.f32.gmra.mxu0 %v1265
        %v1267 = vpop.f32.mrf.mxu0
        %v1268 = vadd.f32 %v1186, %v1267
        %v1269 = vand.u32 %v669, 4294901760
        %1270 = vmatmul.f32.gmra.mxu0 %v1269
        %v1271 = vpop.f32.mrf.mxu0
        %v1272 = vadd.f32 %v1190, %v1271
        %v1273 = vand.u32 %v672, 4294901760
        %1274 = vmatmul.f32.gmra.mxu0 %v1273
        %v1275 = vpop.f32.mrf.mxu0
        %v1276 = vadd.f32 %v1194, %v1275
        %v1277 = vand.u32 %v675, 4294901760
        %1278 = vmatmul.f32.gmra.mxu0 %v1277
        %v1279 = vpop.f32.mrf.mxu0
        %v1280 = vadd.f32 %v1198, %v1279
        %v1281 = vand.u32 %v678, 4294901760
        %1282 = vmatmul.f32.gmra.mxu0 %v1281
        %v1283 = vpop.f32.mrf.mxu0
        %v1284 = vadd.f32 %v1202, %v1283
        %v1285 = vand.u32 %v681, 4294901760
        %1286 = vmatmul.f32.gmra.mxu0 %v1285
        %v1287 = vpop.f32.mrf.mxu0
        %v1288 = vadd.f32 %v1206, %v1287
        %v1289 = vand.u32 %v684, 4294901760
        %1290 = vmatmul.f32.gmra.mxu0 %v1289
        %v1291 = vpop.f32.mrf.mxu0
        %v1292 = vadd.f32 %v1210, %v1291
        %v1293 = vand.u32 %v687, 4294901760
        %1294 = vmatmul.f32.gmra.mxu0 %v1293
        %v1295 = vpop.f32.mrf.mxu0
        %v1296 = vadd.f32 %v1214, %v1295
        %v1297 = vand.u32 %v690, 4294901760
        %1298 = vmatmul.f32.gmra.mxu0 %v1297
        %v1299 = vpop.f32.mrf.mxu0
        %v1300 = vadd.f32 %v1218, %v1299
        %v1301 = vand.u32 %v693, 4294901760
        %1302 = vmatmul.f32.gmra.mxu0 %v1301
        %v1303 = vpop.f32.mrf.mxu0
        %v1304 = vadd.f32 %v1222, %v1303
        %1305 = vdwg.mxu0
        %v1306 = vxor.u32 %v1244, 2147483648
        %v1307 = vxor.u32 %v1248, 2147483648
        %v1308 = vxor.u32 %v1252, 2147483648
        %v1309 = vxor.u32 %v1256, 2147483648
        %v1310 = vxor.u32 %v1260, 2147483648
        %v1311 = vxor.u32 %v1264, 2147483648
        %v1312 = vxor.u32 %v1268, 2147483648
        %v1313 = vxor.u32 %v1272, 2147483648
        %v1314 = vxor.u32 %v1276, 2147483648
        %v1315 = vxor.u32 %v1280, 2147483648
        %v1316 = vxor.u32 %v1284, 2147483648
        %v1317 = vxor.u32 %v1288, 2147483648
        %v1318 = vxor.u32 %v1292, 2147483648
        %v1319 = vxor.u32 %v1296, 2147483648
        %v1320 = vxor.u32 %v1300, 2147483648
        %v1321 = vxor.u32 %v1304, 2147483648
        %v1322 = vmul.f32 %v1306, 1.442695
        %v1323 = vpow.pop %v1322
        %v1324 = vmul.f32 %v1307, 1.442695
        %v1325 = vpow.pop %v1324
        %v1326 = vmul.f32 %v1308, 1.442695
        %v1327 = vpow.pop %v1326
        %v1328 = vmul.f32 %v1309, 1.442695
        %v1329 = vpow.pop %v1328
        %v1330 = vmul.f32 %v1310, 1.442695
        %v1331 = vpow.pop %v1330
        %v1332 = vmul.f32 %v1311, 1.442695
        %v1333 = vpow.pop %v1332
        %v1334 = vmul.f32 %v1312, 1.442695
        %v1335 = vpow.pop %v1334
        %v1336 = vmul.f32 %v1313, 1.442695
        %v1337 = vpow.pop %v1336
        %v1338 = vmul.f32 %v1314, 1.442695
        %v1339 = vpow.pop %v1338
        %v1340 = vmul.f32 %v1315, 1.442695
        %v1341 = vpow.pop %v1340
        %v1342 = vmul.f32 %v1316, 1.442695
        %v1343 = vpow.pop %v1342
        %v1344 = vmul.f32 %v1317, 1.442695
        %v1345 = vpow.pop %v1344
        %v1346 = vmul.f32 %v1318, 1.442695
        %v1347 = vpow.pop %v1346
        %v1348 = vmul.f32 %v1319, 1.442695
        %v1349 = vpow.pop %v1348
        %v1350 = vmul.f32 %v1320, 1.442695
        %v1351 = vpow.pop %v1350
        %v1352 = vmul.f32 %v1321, 1.442695
        %v1353 = vpow.pop %v1352
        %v1354 = vadd.f32 %v1323, 1.0
        %v1355 = vadd.f32 %v1325, 1.0
        %v1356 = vadd.f32 %v1327, 1.0
        %v1357 = vadd.f32 %v1329, 1.0
        %v1358 = vadd.f32 %v1331, 1.0
        %v1359 = vadd.f32 %v1333, 1.0
        %v1360 = vadd.f32 %v1335, 1.0
        %v1361 = vadd.f32 %v1337, 1.0
        %v1362 = vadd.f32 %v1339, 1.0
        %v1363 = vadd.f32 %v1341, 1.0
        %v1364 = vadd.f32 %v1343, 1.0
        %v1365 = vadd.f32 %v1345, 1.0
        %v1366 = vadd.f32 %v1347, 1.0
        %v1367 = vadd.f32 %v1349, 1.0
        %v1368 = vadd.f32 %v1351, 1.0
        %v1369 = vadd.f32 %v1353, 1.0
        %v1370 = vrcp.pop %v1354
        %v1371 = vmul.f32 %v1354, %v1370
        %v1372 = vsub.f32 1.0, %v1371
        %v1373 = vmul.f32 %v1370, %v1372
        %v1374 = vadd.f32 %v1370, %v1373
        %vm1375 = vweird.f32 %v1354
        %vm1376 = vweird.f32 %v1370
        %vm1377 = vmor %vm1375, %vm1376
        %v1378 = vsel %vm1377, %v1370, %v1374
        %v1379 = vand.u32 2147483647, %v1354
        %vm1380 = vcmp.eq.f32.partialorder %v1379, 8.507059e+37
        %v1381 = vand.u32 %v1354, 2147483648
        %v1382 = vor.u32 1.1754944e-38, %v1381
        %v1383 = vsel %vm1380, %v1382, %v1378
        %v1384 = vmul.f32 1.0, %v1383
        %v1385 = vrcp.pop %v1355
        %v1386 = vmul.f32 %v1355, %v1385
        %v1387 = vsub.f32 1.0, %v1386
        %v1388 = vmul.f32 %v1385, %v1387
        %v1389 = vadd.f32 %v1385, %v1388
        %vm1390 = vweird.f32 %v1355
        %vm1391 = vweird.f32 %v1385
        %vm1392 = vmor %vm1390, %vm1391
        %v1393 = vsel %vm1392, %v1385, %v1389
        %v1394 = vand.u32 2147483647, %v1355
        %vm1395 = vcmp.eq.f32.partialorder %v1394, 8.507059e+37
        %v1396 = vand.u32 %v1355, 2147483648
        %v1397 = vor.u32 1.1754944e-38, %v1396
        %v1398 = vsel %vm1395, %v1397, %v1393
        %v1399 = vmul.f32 1.0, %v1398
        %v1400 = vrcp.pop %v1356
        %v1401 = vmul.f32 %v1356, %v1400
        %v1402 = vsub.f32 1.0, %v1401
        %v1403 = vmul.f32 %v1400, %v1402
        %v1404 = vadd.f32 %v1400, %v1403
        %vm1405 = vweird.f32 %v1356
        %vm1406 = vweird.f32 %v1400
        %vm1407 = vmor %vm1405, %vm1406
        %v1408 = vsel %vm1407, %v1400, %v1404
        %v1409 = vand.u32 2147483647, %v1356
        %vm1410 = vcmp.eq.f32.partialorder %v1409, 8.507059e+37
        %v1411 = vand.u32 %v1356, 2147483648
        %v1412 = vor.u32 1.1754944e-38, %v1411
        %v1413 = vsel %vm1410, %v1412, %v1408
        %v1414 = vmul.f32 1.0, %v1413
        %v1415 = vrcp.pop %v1357
        %v1416 = vmul.f32 %v1357, %v1415
        %v1417 = vsub.f32 1.0, %v1416
        %v1418 = vmul.f32 %v1415, %v1417
        %v1419 = vadd.f32 %v1415, %v1418
        %vm1420 = vweird.f32 %v1357
        %vm1421 = vweird.f32 %v1415
        %vm1422 = vmor %vm1420, %vm1421
        %v1423 = vsel %vm1422, %v1415, %v1419
        %v1424 = vand.u32 2147483647, %v1357
        %vm1425 = vcmp.eq.f32.partialorder %v1424, 8.507059e+37
        %v1426 = vand.u32 %v1357, 2147483648
        %v1427 = vor.u32 1.1754944e-38, %v1426
        %v1428 = vsel %vm1425, %v1427, %v1423
        %v1429 = vmul.f32 1.0, %v1428
        %v1430 = vrcp.pop %v1358
        %v1431 = vmul.f32 %v1358, %v1430
        %v1432 = vsub.f32 1.0, %v1431
        %v1433 = vmul.f32 %v1430, %v1432
        %v1434 = vadd.f32 %v1430, %v1433
        %vm1435 = vweird.f32 %v1358
        %vm1436 = vweird.f32 %v1430
        %vm1437 = vmor %vm1435, %vm1436
        %v1438 = vsel %vm1437, %v1430, %v1434
        %v1439 = vand.u32 2147483647, %v1358
        %vm1440 = vcmp.eq.f32.partialorder %v1439, 8.507059e+37
        %v1441 = vand.u32 %v1358, 2147483648
        %v1442 = vor.u32 1.1754944e-38, %v1441
        %v1443 = vsel %vm1440, %v1442, %v1438
        %v1444 = vmul.f32 1.0, %v1443
        %v1445 = vrcp.pop %v1359
        %v1446 = vmul.f32 %v1359, %v1445
        %v1447 = vsub.f32 1.0, %v1446
        %v1448 = vmul.f32 %v1445, %v1447
        %v1449 = vadd.f32 %v1445, %v1448
        %vm1450 = vweird.f32 %v1359
        %vm1451 = vweird.f32 %v1445
        %vm1452 = vmor %vm1450, %vm1451
        %v1453 = vsel %vm1452, %v1445, %v1449
        %v1454 = vand.u32 2147483647, %v1359
        %vm1455 = vcmp.eq.f32.partialorder %v1454, 8.507059e+37
        %v1456 = vand.u32 %v1359, 2147483648
        %v1457 = vor.u32 1.1754944e-38, %v1456
        %v1458 = vsel %vm1455, %v1457, %v1453
        %v1459 = vmul.f32 1.0, %v1458
        %v1460 = vrcp.pop %v1360
        %v1461 = vmul.f32 %v1360, %v1460
        %v1462 = vsub.f32 1.0, %v1461
        %v1463 = vmul.f32 %v1460, %v1462
        %v1464 = vadd.f32 %v1460, %v1463
        %vm1465 = vweird.f32 %v1360
        %vm1466 = vweird.f32 %v1460
        %vm1467 = vmor %vm1465, %vm1466
        %v1468 = vsel %vm1467, %v1460, %v1464
        %v1469 = vand.u32 2147483647, %v1360
        %vm1470 = vcmp.eq.f32.partialorder %v1469, 8.507059e+37
        %v1471 = vand.u32 %v1360, 2147483648
        %v1472 = vor.u32 1.1754944e-38, %v1471
        %v1473 = vsel %vm1470, %v1472, %v1468
        %v1474 = vmul.f32 1.0, %v1473
        %v1475 = vrcp.pop %v1361
        %v1476 = vmul.f32 %v1361, %v1475
        %v1477 = vsub.f32 1.0, %v1476
        %v1478 = vmul.f32 %v1475, %v1477
        %v1479 = vadd.f32 %v1475, %v1478
        %vm1480 = vweird.f32 %v1361
        %vm1481 = vweird.f32 %v1475
        %vm1482 = vmor %vm1480, %vm1481
        %v1483 = vsel %vm1482, %v1475, %v1479
        %v1484 = vand.u32 2147483647, %v1361
        %vm1485 = vcmp.eq.f32.partialorder %v1484, 8.507059e+37
        %v1486 = vand.u32 %v1361, 2147483648
        %v1487 = vor.u32 1.1754944e-38, %v1486
        %v1488 = vsel %vm1485, %v1487, %v1483
        %v1489 = vmul.f32 1.0, %v1488
        %v1490 = vrcp.pop %v1362
        %v1491 = vmul.f32 %v1362, %v1490
        %v1492 = vsub.f32 1.0, %v1491
        %v1493 = vmul.f32 %v1490, %v1492
        %v1494 = vadd.f32 %v1490, %v1493
        %vm1495 = vweird.f32 %v1362
        %vm1496 = vweird.f32 %v1490
        %vm1497 = vmor %vm1495, %vm1496
        %v1498 = vsel %vm1497, %v1490, %v1494
        %v1499 = vand.u32 2147483647, %v1362
        %vm1500 = vcmp.eq.f32.partialorder %v1499, 8.507059e+37
        %v1501 = vand.u32 %v1362, 2147483648
        %v1502 = vor.u32 1.1754944e-38, %v1501
        %v1503 = vsel %vm1500, %v1502, %v1498
        %v1504 = vmul.f32 1.0, %v1503
        %v1505 = vrcp.pop %v1363
        %v1506 = vmul.f32 %v1363, %v1505
        %v1507 = vsub.f32 1.0, %v1506
        %v1508 = vmul.f32 %v1505, %v1507
        %v1509 = vadd.f32 %v1505, %v1508
        %vm1510 = vweird.f32 %v1363
        %vm1511 = vweird.f32 %v1505
        %vm1512 = vmor %vm1510, %vm1511
        %v1513 = vsel %vm1512, %v1505, %v1509
        %v1514 = vand.u32 2147483647, %v1363
        %vm1515 = vcmp.eq.f32.partialorder %v1514, 8.507059e+37
        %v1516 = vand.u32 %v1363, 2147483648
        %v1517 = vor.u32 1.1754944e-38, %v1516
        %v1518 = vsel %vm1515, %v1517, %v1513
        %v1519 = vmul.f32 1.0, %v1518
        %v1520 = vrcp.pop %v1364
        %v1521 = vmul.f32 %v1364, %v1520
        %v1522 = vsub.f32 1.0, %v1521
        %v1523 = vmul.f32 %v1520, %v1522
        %v1524 = vadd.f32 %v1520, %v1523
        %vm1525 = vweird.f32 %v1364
        %vm1526 = vweird.f32 %v1520
        %vm1527 = vmor %vm1525, %vm1526
        %v1528 = vsel %vm1527, %v1520, %v1524
        %v1529 = vand.u32 2147483647, %v1364
        %vm1530 = vcmp.eq.f32.partialorder %v1529, 8.507059e+37
        %v1531 = vand.u32 %v1364, 2147483648
        %v1532 = vor.u32 1.1754944e-38, %v1531
        %v1533 = vsel %vm1530, %v1532, %v1528
        %v1534 = vmul.f32 1.0, %v1533
        %v1535 = vrcp.pop %v1365
        %v1536 = vmul.f32 %v1365, %v1535
        %v1537 = vsub.f32 1.0, %v1536
        %v1538 = vmul.f32 %v1535, %v1537
        %v1539 = vadd.f32 %v1535, %v1538
        %vm1540 = vweird.f32 %v1365
        %vm1541 = vweird.f32 %v1535
        %vm1542 = vmor %vm1540, %vm1541
        %v1543 = vsel %vm1542, %v1535, %v1539
        %v1544 = vand.u32 2147483647, %v1365
        %vm1545 = vcmp.eq.f32.partialorder %v1544, 8.507059e+37
        %v1546 = vand.u32 %v1365, 2147483648
        %v1547 = vor.u32 1.1754944e-38, %v1546
        %v1548 = vsel %vm1545, %v1547, %v1543
        %v1549 = vmul.f32 1.0, %v1548
        %v1550 = vrcp.pop %v1366
        %v1551 = vmul.f32 %v1366, %v1550
        %v1552 = vsub.f32 1.0, %v1551
        %v1553 = vmul.f32 %v1550, %v1552
        %v1554 = vadd.f32 %v1550, %v1553
        %vm1555 = vweird.f32 %v1366
        %vm1556 = vweird.f32 %v1550
        %vm1557 = vmor %vm1555, %vm1556
        %v1558 = vsel %vm1557, %v1550, %v1554
        %v1559 = vand.u32 2147483647, %v1366
        %vm1560 = vcmp.eq.f32.partialorder %v1559, 8.507059e+37
        %v1561 = vand.u32 %v1366, 2147483648
        %v1562 = vor.u32 1.1754944e-38, %v1561
        %v1563 = vsel %vm1560, %v1562, %v1558
        %v1564 = vmul.f32 1.0, %v1563
        %v1565 = vrcp.pop %v1367
        %v1566 = vmul.f32 %v1367, %v1565
        %v1567 = vsub.f32 1.0, %v1566
        %v1568 = vmul.f32 %v1565, %v1567
        %v1569 = vadd.f32 %v1565, %v1568
        %vm1570 = vweird.f32 %v1367
        %vm1571 = vweird.f32 %v1565
        %vm1572 = vmor %vm1570, %vm1571
        %v1573 = vsel %vm1572, %v1565, %v1569
        %v1574 = vand.u32 2147483647, %v1367
        %vm1575 = vcmp.eq.f32.partialorder %v1574, 8.507059e+37
        %v1576 = vand.u32 %v1367, 2147483648
        %v1577 = vor.u32 1.1754944e-38, %v1576
        %v1578 = vsel %vm1575, %v1577, %v1573
        %v1579 = vmul.f32 1.0, %v1578
        %v1580 = vrcp.pop %v1368
        %v1581 = vmul.f32 %v1368, %v1580
        %v1582 = vsub.f32 1.0, %v1581
        %v1583 = vmul.f32 %v1580, %v1582
        %v1584 = vadd.f32 %v1580, %v1583
        %vm1585 = vweird.f32 %v1368
        %vm1586 = vweird.f32 %v1580
        %vm1587 = vmor %vm1585, %vm1586
        %v1588 = vsel %vm1587, %v1580, %v1584
        %v1589 = vand.u32 2147483647, %v1368
        %vm1590 = vcmp.eq.f32.partialorder %v1589, 8.507059e+37
        %v1591 = vand.u32 %v1368, 2147483648
        %v1592 = vor.u32 1.1754944e-38, %v1591
        %v1593 = vsel %vm1590, %v1592, %v1588
        %v1594 = vmul.f32 1.0, %v1593
        %v1595 = vrcp.pop %v1369
        %v1596 = vmul.f32 %v1369, %v1595
        %v1597 = vsub.f32 1.0, %v1596
        %v1598 = vmul.f32 %v1595, %v1597
        %v1599 = vadd.f32 %v1595, %v1598
        %vm1600 = vweird.f32 %v1369
        %vm1601 = vweird.f32 %v1595
        %vm1602 = vmor %vm1600, %vm1601
        %v1603 = vsel %vm1602, %v1595, %v1599
        %v1604 = vand.u32 2147483647, %v1369
        %vm1605 = vcmp.eq.f32.partialorder %v1604, 8.507059e+37
        %v1606 = vand.u32 %v1369, 2147483648
        %v1607 = vor.u32 1.1754944e-38, %v1606
        %v1608 = vsel %vm1605, %v1607, %v1603
        %v1609 = vmul.f32 1.0, %v1608
        %1611 = vset.pattern.permute.xlu0 0
        %1612 = vperm.xlu0 %1611, %v1384
        %v1613 = vpop.permute.xlu0 %1612
        %1616 = vset.pattern.permute.xlu0 0
        %1617 = vperm.xlu0 %1616, %v1399
        %v1618 = vpop.permute.xlu0 %1617
        %1621 = vset.pattern.permute.xlu0 0
        %1622 = vperm.xlu0 %1621, %v1414
        %v1623 = vpop.permute.xlu0 %1622
        %1626 = vset.pattern.permute.xlu0 0
        %1627 = vperm.xlu0 %1626, %v1429
        %v1628 = vpop.permute.xlu0 %1627
        %1631 = vset.pattern.permute.xlu0 0
        %1632 = vperm.xlu0 %1631, %v1444
        %v1633 = vpop.permute.xlu0 %1632
        %1636 = vset.pattern.permute.xlu0 0
        %1637 = vperm.xlu0 %1636, %v1459
        %v1638 = vpop.permute.xlu0 %1637
        %1641 = vset.pattern.permute.xlu0 0
        %1642 = vperm.xlu0 %1641, %v1474
        %v1643 = vpop.permute.xlu0 %1642
        %1646 = vset.pattern.permute.xlu0 0
        %1647 = vperm.xlu0 %1646, %v1489
        %v1648 = vpop.permute.xlu0 %1647
        %1651 = vset.pattern.permute.xlu0 0
        %1652 = vperm.xlu0 %1651, %v1504
        %v1653 = vpop.permute.xlu0 %1652
        %1656 = vset.pattern.permute.xlu0 0
        %1657 = vperm.xlu0 %1656, %v1519
        %v1658 = vpop.permute.xlu0 %1657
        %1661 = vset.pattern.permute.xlu0 0
        %1662 = vperm.xlu0 %1661, %v1534
        %v1663 = vpop.permute.xlu0 %1662
        %1666 = vset.pattern.permute.xlu0 0
        %1667 = vperm.xlu0 %1666, %v1549
        %v1668 = vpop.permute.xlu0 %1667
        %1671 = vset.pattern.permute.xlu0 0
        %1672 = vperm.xlu0 %1671, %v1564
        %v1673 = vpop.permute.xlu0 %1672
        %1676 = vset.pattern.permute.xlu0 0
        %1677 = vperm.xlu0 %1676, %v1579
        %v1678 = vpop.permute.xlu0 %1677
        %1681 = vset.pattern.permute.xlu0 0
        %1682 = vperm.xlu0 %1681, %v1594
        %v1683 = vpop.permute.xlu0 %1682
        %1686 = vset.pattern.permute.xlu0 0
        %1687 = vperm.xlu0 %1686, %v1609
        %v1688 = vpop.permute.xlu0 %1687
        %v1690 = vmul.f32 %v191, %v1613
        %v1691 = vmul.f32 %v192, %v1613
        %v1692 = vmul.f32 %v193, %v1618
        %v1693 = vmul.f32 %v194, %v1618
        %v1694 = vmul.f32 %v195, %v1623
        %v1695 = vmul.f32 %v196, %v1623
        %v1696 = vmul.f32 %v197, %v1628
        %v1697 = vmul.f32 %v198, %v1628
        %v1698 = vmul.f32 %v199, %v1633
        %v1699 = vmul.f32 %v200, %v1633
        %v1700 = vmul.f32 %v201, %v1638
        %v1701 = vmul.f32 %v202, %v1638
        %v1702 = vmul.f32 %v203, %v1643
        %v1703 = vmul.f32 %v204, %v1643
        %v1704 = vmul.f32 %v205, %v1648
        %v1705 = vmul.f32 %v206, %v1648
        %v1706 = vmul.f32 %v207, %v1653
        %v1707 = vmul.f32 %v208, %v1653
        %v1708 = vmul.f32 %v209, %v1658
        %v1709 = vmul.f32 %v210, %v1658
        %v1710 = vmul.f32 %v211, %v1663
        %v1711 = vmul.f32 %v212, %v1663
        %v1712 = vmul.f32 %v213, %v1668
        %v1713 = vmul.f32 %v214, %v1668
        %v1714 = vmul.f32 %v215, %v1673
        %v1715 = vmul.f32 %v216, %v1673
        %v1716 = vmul.f32 %v217, %v1678
        %v1717 = vmul.f32 %v218, %v1678
        %v1718 = vmul.f32 %v219, %v1683
        %v1719 = vmul.f32 %v220, %v1683
        %v1720 = vmul.f32 %v221, %v1688
        %v1721 = vmul.f32 %v222, %v1688
        %1722 = vst [vmem:[%s190] sm:$0xff] %v1690
        %1723 = vst [vmem:[%s190 + $0x8] sm:$0xff] %v1691
        %1724 = vst [vmem:[%s190 + $0x10] sm:$0xff] %v1692
        %1725 = vst [vmem:[%s190 + $0x18] sm:$0xff] %v1693
        %1726 = vst [vmem:[%s190 + $0x20] sm:$0xff] %v1694
        %1727 = vst [vmem:[%s190 + $0x28] sm:$0xff] %v1695
        %1728 = vst [vmem:[%s190 + $0x30] sm:$0xff] %v1696
        %1729 = vst [vmem:[%s190 + $0x38] sm:$0xff] %v1697
        %1730 = vst [vmem:[%s190 + $0x40] sm:$0xff] %v1698
        %1731 = vst [vmem:[%s190 + $0x48] sm:$0xff] %v1699
        %1732 = vst [vmem:[%s190 + $0x50] sm:$0xff] %v1700
        %1733 = vst [vmem:[%s190 + $0x58] sm:$0xff] %v1701
        %1734 = vst [vmem:[%s190 + $0x60] sm:$0xff] %v1702
        %1735 = vst [vmem:[%s190 + $0x68] sm:$0xff] %v1703
        %1736 = vst [vmem:[%s190 + $0x70] sm:$0xff] %v1704
        %1737 = vst [vmem:[%s190 + $0x78] sm:$0xff] %v1705
        %1738 = vst [vmem:[%s190 + $0x80] sm:$0xff] %v1706
        %1739 = vst [vmem:[%s190 + $0x88] sm:$0xff] %v1707
        %1740 = vst [vmem:[%s190 + $0x90] sm:$0xff] %v1708
        %1741 = vst [vmem:[%s190 + $0x98] sm:$0xff] %v1709
        %1742 = vst [vmem:[%s190 + $0xa0] sm:$0xff] %v1710
        %1743 = vst [vmem:[%s190 + $0xa8] sm:$0xff] %v1711
        %1744 = vst [vmem:[%s190 + $0xb0] sm:$0xff] %v1712
        %1745 = vst [vmem:[%s190 + $0xb8] sm:$0xff] %v1713
        %1746 = vst [vmem:[%s190 + $0xc0] sm:$0xff] %v1714
        %1747 = vst [vmem:[%s190 + $0xc8] sm:$0xff] %v1715
        %1748 = vst [vmem:[%s190 + $0xd0] sm:$0xff] %v1716
        %1749 = vst [vmem:[%s190 + $0xd8] sm:$0xff] %v1717
        %1750 = vst [vmem:[%s190 + $0xe0] sm:$0xff] %v1718
        %1751 = vst [vmem:[%s190 + $0xe8] sm:$0xff] %v1719
        %1752 = vst [vmem:[%s190 + $0xf0] sm:$0xff] %v1720
        %1753 = vst [vmem:[%s190 + $0xf8] sm:$0xff] %v1721
        %s1754 = sand.u32 %s96, 1
        %s1755 = scalar_lea.sflag [#allocation4], %s1754
        %s1756 = sand.u32 %s96, 1
        %s1757 = smul.addr %s1756, 256
        %s1758 = scalar_lea.vmem [#allocation5], %s1757
        // Predicated region
        $region37: #{tpu_custom_call.1} parent=31 // pred_check
          %p1759 = pneg %p106
        $region38: #{tpu_custom_call.1} parent=31 // pred_check_branch
          %1761 = sbr.rel (%p1759) target = $region40
        $region39: #{tpu_custom_call.1} parent=31 // pred_region
          %1763 = vsyncadd %s1755, 0
          %s1764 = smul.addr %s20, 32
          %s1765 = smul.addr %s1764, 8
          %s1766 = scalar_lea.hbm %s3, %s1765
          %s1767 = sshll.u32 %s1758, 4
          %s1768 = int_to_ptr.vmem [resolvable:$true] %s1767
          %s1769 = sshll.u32 %s1766, 4
          %s1770 = int_to_ptr.hbm [resolvable:$true] %s1769
          %1775 = dma.vmem_to_hbm [thread:$0]  %s1768, 4096, %s1770, %s1755, 256, 256, 16
        $region40: #{tpu_custom_call.1} parent=31 // pred_fallthru
          _
      $region32: #{tpu_custom_call.1} parent=5 // pred_fallthru
        _
      %p1776 = scmp.le.s32.totalorder 2, %s15
      // Predicated region
      $region41: #{tpu_custom_call.1} parent=5 // pred_check
        %p1777 = pneg %p1776
      $region42: #{tpu_custom_call.1} parent=5 // pred_check_branch
        %1779 = sbr.rel (%p1777) target = $region44
      $region43: #{tpu_custom_call.1} parent=5 // pred_region
        %s1780 = ssub.s32 %s15, 2
        // Predicated region
        $region45: #{tpu_custom_call.1} parent=43 // pred_check
          %p1781 = pneg %p112
        $region46: #{tpu_custom_call.1} parent=43 // pred_check_branch
          %1783 = sbr.rel (%p1781) target = $region48
        $region47: #{tpu_custom_call.1} parent=43 // pred_region
          %s1784 = sand.u32 %s97, 1
          %s1785 = scalar_lea.sflag [#allocation4], %s1784
          %s1786 = sand.u32 %s97, 1
          %s1787 = smul.addr %s1786, 256
          %s1788 = scalar_lea.vmem [#allocation5], %s1787
          %1790 = dma.done %s1785, 4096
        $region48: #{tpu_custom_call.1} parent=43 // pred_fallthru
          _
      $region44: #{tpu_custom_call.1} parent=5 // pred_fallthru
        _
    $region6: #{tpu_custom_call.1} parent=1 // loop_footer
      %s19 = sadd.s32 1, %s15
    $region7: #{tpu_custom_call.1} parent=1 // loop_footer_branch
      %14 = sbr.rel target = $region3
    $region8: #{tpu_custom_call.1} parent=1 // loop_exit
      _
    %1791 = vsyncpa [#allocation3], 1
    %s1792 = scalar_lea.sflag [#allocation3], 1
    %1793 = vsyncpa %s1792, 1
    %1794 = vsyncpa [#allocation4], 1
    %s1795 = scalar_lea.sflag [#allocation4], 1
    %1796 = vsyncpa %s1795, 1

</llo_original>
